<compile_context>
chip_gen: v6e
topology: v6e:2x2x1
jax: 0.10.0
libtpu: 0.0.40
codegen_flags: <defaults>
</compile_context>

<pallas_src>
import functools

import jax
import jax.numpy as jnp
from jax.experimental import pallas as pl
from jax.experimental.pallas import tpu as pltpu

N_NODES = 67
IN_DIM = N_NODES * (N_NODES + 1) // 2      # 2278 (module's hardcoded input_dim)
FLAT_DIM = N_NODES * N_NODES               # 4489
LANE = 128
BN_EPS = 1e-5


def _round_up(x, m):
    return (x + m - 1) // m * m


FLAT_PAD = _round_up(FLAT_DIM, LANE)       # 4608 -> lane-aligned matmul K dim


# ---------------------------------------------------------------------------
# Fused kernel: x -> [Linear -> ReLU -> BatchNorm1d(train)] * n_layers
# refs = (x_ref, [w, b, gamma, beta] * n_layers, out_ref); everything in VMEM.
# ---------------------------------------------------------------------------
def _fused_mlp_kernel(n_layers, *refs):
    x_ref = refs[0]
    o_ref = refs[-1]
    p = refs[1:-1]

    x = x_ref[...]                                            # (B, K0) f32
    for l in range(n_layers):
        w, b, g, beta = p[4 * l:4 * l + 4]
        # Linear on the MXU (f32 accumulate) + bias, ReLU on the VPU.
        y = jnp.dot(x, w[...], preferred_element_type=jnp.float32) + b[...]
        y = jnp.maximum(y, 0.0)
        # BatchNorm1d, training-mode batch stats, single pass over y.
        mean = jnp.mean(y, axis=0, keepdims=True)             # (1, N)
        mean_sq = jnp.mean(y * y, axis=0, keepdims=True)      # (1, N)
        var = mean_sq - mean * mean
        # Fold gamma/rsqrt/mean/beta into a single per-feature affine (one FMA/elem).
        scale = g[...] * jax.lax.rsqrt(var + BN_EPS)          # (1, N), EUP rsqrt
        shift = beta[...] - mean * scale
        x = y * scale + shift
    o_ref[...] = x.astype(o_ref.dtype)


def _vmem_spec():
    # Whole-array, single-buffered VMEM residency (no grid -> no pipelining).
    return pl.BlockSpec(memory_space=pltpu.MemorySpace.VMEM)


def extract_sc_feat_mlp_forward(packed_params, batched_sc, out_dim):
    """packed_params: list of (w_kernel, b, gamma, beta) from pack_params()."""
    B = batched_sc.shape[0]
    # Contiguous reshape is free; pad the flat dim to a lane multiple so the
    # first matmul's K dimension is (8,128)-aligned (pad weight rows are zero).
    x = batched_sc.reshape(B, FLAT_DIM)
    x = jnp.pad(x, ((0, 0), (0, FLAT_PAD - FLAT_DIM)))

    n_layers = len(packed_params)
    flat = []
    for w, b, g, beta in packed_params:
        flat.extend((w, b, g, beta))
    out_pad = packed_params[-1][0].shape[1]

    out = pl.pallas_call(
        functools.partial(_fused_mlp_kernel, n_layers),
        out_shape=jax.ShapeDtypeStruct((B, out_pad), jnp.float32),
        in_specs=[_vmem_spec()] * (1 + 4 * n_layers),
        out_specs=_vmem_spec(),
    )(x, *flat)
    return out[:, :out_dim]


# ---------------------------------------------------------------------------
# Parameter init (PyTorch-shaped) and packing into kernel layout.
# ---------------------------------------------------------------------------
def init_extract_sc_feat_mlp(key, output_dims):
    """PyTorch-style params: w (out, in), b (out,), gamma (out,), beta (out,)."""
    params = []
    in_dim = IN_DIM
    for out_dim in output_dims:
        key, kw, kb = jax.random.split(key, 3)
        bound = 1.0 / float(in_dim) ** 0.5
        w = jax.random.uniform(kw, (out_dim, in_dim), jnp.float32, -bound, bound)
        b = jax.random.uniform(kb, (out_dim,), jnp.float32, -bound, bound)
        gamma = jnp.ones((out_dim,), jnp.float32)
        beta = jnp.zeros((out_dim,), jnp.float32)
        params.append((w, b, gamma, beta))
        in_dim = out_dim
    return params


def pack_params(params):
    """Fold triu gather into layer-0 weight and pad feature dims to 128 lanes.

    Pad columns get zero weight / bias / gamma / beta, and pad rows of the
    next layer's weight are zero, so semantics are exactly preserved (padded
    output features are ReLU(0)=0, BN with gamma=beta=0 -> 0, then sliced off).
    """
    iu0, iu1 = jnp.triu_indices(N_NODES)
    flat_idx = iu0 * N_NODES + iu1                         # (2278,)
    packed = []
    prev_pad = None
    for li, (w, b, g, beta) in enumerate(params):
        out_dim, in_dim = w.shape
        out_pad = _round_up(out_dim, LANE)
        if li == 0:
            w_k = jnp.zeros((FLAT_PAD, out_pad), jnp.float32)
            w_k = w_k.at[flat_idx, :out_dim].set(w.T)      # (4608, out_pad)
        else:
            w_k = jnp.zeros((prev_pad, out_pad), jnp.float32)
            w_k = w_k.at[:in_dim, :out_dim].set(w.T)
        b_k = jnp.zeros((1, out_pad), jnp.float32).at[0, :out_dim].set(b)
        g_k = jnp.zeros((1, out_pad), jnp.float32).at[0, :out_dim].set(g)
        be_k = jnp.zeros((1, out_pad), jnp.float32).at[0, :out_dim].set(beta)
        packed.append((w_k, b_k, g_k, be_k))
        prev_pad = out_pad
    return packed


# ---------------------------------------------------------------------------
# Pure-JAX reference with the original (unfolded, unpadded) semantics.
# ---------------------------------------------------------------------------
def batched_sc_to_triu_vector(batched_sc):
    n = batched_sc.shape[-1]
    iu0, iu1 = jnp.triu_indices(n)
    return batched_sc[:, iu0, iu1]                         # (B, n*(n+1)//2)


def _reference_forward(params, batched_sc):
    x = batched_sc_to_triu_vector(batched_sc)
    for w, b, g, beta in params:
        y = jnp.maximum(x @ w.T + b[None, :], 0.0)
        mean = jnp.mean(y, axis=0, keepdims=True)
        var = jnp.mean((y - mean) ** 2, axis=0, keepdims=True)
        x = (y - mean) * jax.lax.rsqrt(var + BN_EPS) * g[None, :] + beta[None, :]
    return x


if __name__ == "__main__":
    key = jax.random.PRNGKey(0)
    k_sc, k_params = jax.random.split(key)

    B = 8
    output_dims = [64, 32]

    # Symmetric structural-connectivity matrices, (B, 67, 67).
    a = jax.random.uniform(k_sc, (B, N_NODES, N_NODES), jnp.float32)
    batched_sc = 0.5 * (a + jnp.transpose(a, (0, 2, 1)))

    params = init_extract_sc_feat_mlp(k_params, output_dims)
    packed = pack_params(params)

    @jax.jit
    def fwd(pk, sc):
        return extract_sc_feat_mlp_forward(pk, sc, output_dims[-1])

    out = fwd(packed, batched_sc)
    out = jax.block_until_ready(out)

    ref = _reference_forward(params, batched_sc)
    assert out.shape == (B, output_dims[-1])
    assert jnp.allclose(out, ref, atol=1e-4, rtol=1e-4), float(
        jnp.max(jnp.abs(out - ref))
    )

    print("KERNEL_OK")
</pallas_src>

<mosaic_0001>
module attributes {stable_mosaic.version = 11 : i64} {
  func.func @_fused_mlp_kernel(%arg0: memref<8x4608xf32, #tpu.memory_space<vmem>>, %arg1: memref<4608x128xf32, #tpu.memory_space<vmem>>, %arg2: memref<1x128xf32, #tpu.memory_space<vmem>>, %arg3: memref<1x128xf32, #tpu.memory_space<vmem>>, %arg4: memref<1x128xf32, #tpu.memory_space<vmem>>, %arg5: memref<128x128xf32, #tpu.memory_space<vmem>>, %arg6: memref<1x128xf32, #tpu.memory_space<vmem>>, %arg7: memref<1x128xf32, #tpu.memory_space<vmem>>, %arg8: memref<1x128xf32, #tpu.memory_space<vmem>>, %arg9: memref<8x128xf32, #tpu.memory_space<vmem>>) attributes {dimension_semantics = [], scalar_prefetch = 0 : i64, scratch_operands = 0 : i64, tpu.core_type = #tpu.core_type<tc>} {
    %c0 = arith.constant 0 : index
    %c0_0 = arith.constant 0 : index
    %0 = vector.load %arg0[%c0, %c0_0] : memref<8x4608xf32, #tpu.memory_space<vmem>>, vector<8x4608xf32>
    %c0_1 = arith.constant 0 : index
    %c0_2 = arith.constant 0 : index
    %1 = vector.load %arg1[%c0_1, %c0_2] : memref<4608x128xf32, #tpu.memory_space<vmem>>, vector<4608x128xf32>
    %cst = arith.constant dense<0.000000e+00> : vector<8x128xf32>
    %2 = tpu.matmul %0, %1, %cst {dimension_numbers = #tpu.dot_dimension_numbers<[1], [0], [0], [1], [0, 0, 1, 1], [], []>} : vector<8x4608xf32>, vector<4608x128xf32>, vector<8x128xf32> -> vector<8x128xf32>
    %c0_3 = arith.constant 0 : index
    %c0_4 = arith.constant 0 : index
    %3 = vector.load %arg2[%c0_3, %c0_4] : memref<1x128xf32, #tpu.memory_space<vmem>>, vector<1x128xf32>
    %4 = vector.broadcast %3 : vector<1x128xf32> to vector<8x128xf32>
    %5 = arith.addf %2, %4 : vector<8x128xf32>
    %cst_5 = arith.constant 0.000000e+00 : f32
    %6 = vector.broadcast %cst_5 : f32 to vector<8x128xf32>
    %7 = arith.maximumf %5, %6 : vector<8x128xf32>
    %cst_6 = arith.constant dense<0.000000e+00> : vector<128xf32>
    %8 = vector.multi_reduction <add>, %7, %cst_6 [0] : vector<8x128xf32> to vector<128xf32>
    %9 = vector.shape_cast %8 : vector<128xf32> to vector<1x128xf32>
    %cst_7 = arith.constant 8.000000e+00 : f32
    %10 = vector.broadcast %cst_7 : f32 to vector<1x128xf32>
    %11 = arith.divf %9, %10 : vector<1x128xf32>
    %12 = arith.mulf %7, %7 : vector<8x128xf32>
    %cst_8 = arith.constant dense<0.000000e+00> : vector<128xf32>
    %13 = vector.multi_reduction <add>, %12, %cst_8 [0] : vector<8x128xf32> to vector<128xf32>
    %14 = vector.shape_cast %13 : vector<128xf32> to vector<1x128xf32>
    %cst_9 = arith.constant 8.000000e+00 : f32
    %15 = vector.broadcast %cst_9 : f32 to vector<1x128xf32>
    %16 = arith.divf %14, %15 : vector<1x128xf32>
    %17 = arith.mulf %11, %11 : vector<1x128xf32>
    %18 = arith.subf %16, %17 : vector<1x128xf32>
    %c0_10 = arith.constant 0 : index
    %c0_11 = arith.constant 0 : index
    %19 = vector.load %arg3[%c0_10, %c0_11] : memref<1x128xf32, #tpu.memory_space<vmem>>, vector<1x128xf32>
    %cst_12 = arith.constant 9.99999974E-6 : f32
    %20 = vector.broadcast %cst_12 : f32 to vector<1x128xf32>
    %21 = arith.addf %18, %20 : vector<1x128xf32>
    %22 = math.rsqrt %21 : vector<1x128xf32>
    %23 = arith.mulf %19, %22 : vector<1x128xf32>
    %c0_13 = arith.constant 0 : index
    %c0_14 = arith.constant 0 : index
    %24 = vector.load %arg4[%c0_13, %c0_14] : memref<1x128xf32, #tpu.memory_space<vmem>>, vector<1x128xf32>
    %25 = arith.mulf %11, %23 : vector<1x128xf32>
    %26 = arith.subf %24, %25 : vector<1x128xf32>
    %27 = vector.broadcast %23 : vector<1x128xf32> to vector<8x128xf32>
    %28 = arith.mulf %7, %27 : vector<8x128xf32>
    %29 = vector.broadcast %26 : vector<1x128xf32> to vector<8x128xf32>
    %30 = arith.addf %28, %29 : vector<8x128xf32>
    %c0_15 = arith.constant 0 : index
    %c0_16 = arith.constant 0 : index
    %31 = vector.load %arg5[%c0_15, %c0_16] : memref<128x128xf32, #tpu.memory_space<vmem>>, vector<128x128xf32>
    %cst_17 = arith.constant dense<0.000000e+00> : vector<8x128xf32>
    %32 = tpu.matmul %30, %31, %cst_17 {dimension_numbers = #tpu.dot_dimension_numbers<[1], [0], [0], [1], [0, 0, 1, 1], [], []>} : vector<8x128xf32>, vector<128x128xf32>, vector<8x128xf32> -> vector<8x128xf32>
    %c0_18 = arith.constant 0 : index
    %c0_19 = arith.constant 0 : index
    %33 = vector.load %arg6[%c0_18, %c0_19] : memref<1x128xf32, #tpu.memory_space<vmem>>, vector<1x128xf32>
    %34 = vector.broadcast %33 : vector<1x128xf32> to vector<8x128xf32>
    %35 = arith.addf %32, %34 : vector<8x128xf32>
    %cst_20 = arith.constant 0.000000e+00 : f32
    %36 = vector.broadcast %cst_20 : f32 to vector<8x128xf32>
    %37 = arith.maximumf %35, %36 : vector<8x128xf32>
    %cst_21 = arith.constant dense<0.000000e+00> : vector<128xf32>
    %38 = vector.multi_reduction <add>, %37, %cst_21 [0] : vector<8x128xf32> to vector<128xf32>
    %39 = vector.shape_cast %38 : vector<128xf32> to vector<1x128xf32>
    %cst_22 = arith.constant 8.000000e+00 : f32
    %40 = vector.broadcast %cst_22 : f32 to vector<1x128xf32>
    %41 = arith.divf %39, %40 : vector<1x128xf32>
    %42 = arith.mulf %37, %37 : vector<8x128xf32>
    %cst_23 = arith.constant dense<0.000000e+00> : vector<128xf32>
    %43 = vector.multi_reduction <add>, %42, %cst_23 [0] : vector<8x128xf32> to vector<128xf32>
    %44 = vector.shape_cast %43 : vector<128xf32> to vector<1x128xf32>
    %cst_24 = arith.constant 8.000000e+00 : f32
    %45 = vector.broadcast %cst_24 : f32 to vector<1x128xf32>
    %46 = arith.divf %44, %45 : vector<1x128xf32>
    %47 = arith.mulf %41, %41 : vector<1x128xf32>
    %48 = arith.subf %46, %47 : vector<1x128xf32>
    %c0_25 = arith.constant 0 : index
    %c0_26 = arith.constant 0 : index
    %49 = vector.load %arg7[%c0_25, %c0_26] : memref<1x128xf32, #tpu.memory_space<vmem>>, vector<1x128xf32>
    %cst_27 = arith.constant 9.99999974E-6 : f32
    %50 = vector.broadcast %cst_27 : f32 to vector<1x128xf32>
    %51 = arith.addf %48, %50 : vector<1x128xf32>
    %52 = math.rsqrt %51 : vector<1x128xf32>
    %53 = arith.mulf %49, %52 : vector<1x128xf32>
    %c0_28 = arith.constant 0 : index
    %c0_29 = arith.constant 0 : index
    %54 = vector.load %arg8[%c0_28, %c0_29] : memref<1x128xf32, #tpu.memory_space<vmem>>, vector<1x128xf32>
    %55 = arith.mulf %41, %53 : vector<1x128xf32>
    %56 = arith.subf %54, %55 : vector<1x128xf32>
    %57 = vector.broadcast %53 : vector<1x128xf32> to vector<8x128xf32>
    %58 = arith.mulf %37, %57 : vector<8x128xf32>
    %59 = vector.broadcast %56 : vector<1x128xf32> to vector<8x128xf32>
    %60 = arith.addf %58, %59 : vector<8x128xf32>
    %c0_30 = arith.constant 0 : index
    %c0_31 = arith.constant 0 : index
    %61 = vector.load %arg9[%c0_30, %c0_31] : memref<8x128xf32, #tpu.memory_space<vmem>>, vector<8x128xf32>
    tpu.vector_store %arg9[%c0_30, %c0_31], %60 {strides = array<i32>} : memref<8x128xf32, #tpu.memory_space<vmem>>, vector<8x128xf32>,
    return
  }
}

</mosaic_0001>

<llo_original>
// kernel: fwd.1
$region0: #{fwd.1}
  #allocation0 [shape = 'u32[]', space=smem, size = 0x4, offset = 0x4, fixed_abs, tag = 'smem constant byte address 0x4 - core index']
  #allocation1 [shape = 'u32[144,128]{1,0:T(1,128)}', space=vmem, size = 0x12000, scoped, tag = 'internal scratch']
  %s0 = inlined_call_operand.vmem [shape: f32[8,4608], index: 0, kind: input, shape index: {}]
  %s1 = inlined_call_operand.hbm [shape: f32[4608,128], index: 1, kind: input, shape index: {}]
  %s2 = inlined_call_operand.hbm [shape: f32[1,128], index: 2, kind: input, shape index: {}]
  %s3 = inlined_call_operand.hbm [shape: f32[1,128], index: 3, kind: input, shape index: {}]
  %s4 = inlined_call_operand.hbm [shape: f32[1,128], index: 4, kind: input, shape index: {}]
  %s5 = inlined_call_operand.hbm [shape: f32[128,128], index: 5, kind: input, shape index: {}]
  %s6 = inlined_call_operand.hbm [shape: f32[1,128], index: 6, kind: input, shape index: {}]
  %s7 = inlined_call_operand.hbm [shape: f32[1,128], index: 7, kind: input, shape index: {}]
  %s8 = inlined_call_operand.hbm [shape: f32[1,128], index: 8, kind: input, shape index: {}]
  %s9 = inlined_call_operand.hbm [shape: f32[8,128], index: 9, kind: output, shape index: {}]
  %s10 = sld [smem:[#allocation0]]
  $region78: #{fwd.1} parent=0
    _
  %s12 = ssub.s32 1, %s10
  %s13 = scalar_select 0, %s12, %s10
  $region1: #{fwd.1} parent=0
    #allocation2 [shape = 'u8[2359296]{0}', space=vmem, size = 0x240000, scoped, tag = 'input window, operand 1, single buffered']
    #allocation3 [shape = 's32[1]{0}', space=sflag, size = 0x4, scoped, tag = 'scoped memory for fwd.1']
    #allocation4 [shape = 's32[1]{0}', space=sflag, size = 0x4, scoped, tag = 'scoped memory for fwd.1']
    #allocation5 [shape = 'u8[512]{0}', space=vmem, size = 0x400, scoped, tag = 'input window, operand 2, single buffered']
    #allocation6 [shape = 's32[1]{0}', space=sflag, size = 0x4, scoped, tag = 'scoped memory for fwd.1']
    #allocation7 [shape = 'u8[512]{0}', space=vmem, size = 0x400, scoped, tag = 'input window, operand 3, single buffered']
    #allocation8 [shape = 'u8[512]{0}', space=vmem, size = 0x400, scoped, tag = 'input window, operand 4, single buffered']
    #allocation9 [shape = 's32[1]{0}', space=sflag, size = 0x4, scoped, tag = 'scoped memory for fwd.1']
    #allocation10 [shape = 'u8[65536]{0}', space=vmem, size = 0x10000, scoped, tag = 'input window, operand 5, single buffered']
    #allocation11 [shape = 'u8[512]{0}', space=vmem, size = 0x400, scoped, tag = 'input window, operand 6, single buffered']
    #allocation12 [shape = 's32[1]{0}', space=sflag, size = 0x4, scoped, tag = 'scoped memory for fwd.1']
    #allocation13 [shape = 'u8[512]{0}', space=vmem, size = 0x400, scoped, tag = 'input window, operand 7, single buffered']
    #allocation14 [shape = 'u8[512]{0}', space=vmem, size = 0x400, scoped, tag = 'input window, operand 8, single buffered']
    #allocation15 [shape = 's32[1]{0}', space=sflag, size = 0x4, scoped, tag = 'scoped memory for fwd.1']
    #allocation16 [shape = 'u8[4096]{0}', space=vmem, size = 0x1000, scoped, tag = 'output window, operand 0, single buffered']
    %14 = vsyncpa [#allocation3], 0
    %15 = vsyncpa [#allocation6], 0
    %16 = vsyncpa [#allocation9], 0
    %17 = vsyncpa [#allocation12], 0
    %18 = vsyncpa [#allocation15], 0
    %19 = vsyncpa [#allocation4], 0
    // Predicated region
    $region2: #{fwd.1} parent=1 // pred_check
      _
    $region3: #{fwd.1} parent=1 // pred_check_branch
      %21 = sbr.rel (0) target = $region5
    $region4: #{fwd.1} parent=1 // pred_region
      _
    $region5: #{fwd.1} parent=1 // pred_fallthru
      _
    // Predicated region
    $region6: #{fwd.1} parent=1 // pred_check
      _
    $region7: #{fwd.1} parent=1 // pred_check_branch
      %23 = sbr.rel (0) target = $region9
    $region8: #{fwd.1} parent=1 // pred_region
      %s25 = ssub.s32 73728, 73728
      %26 = vsyncadd [#allocation3], %s25
      %s27 = sshll.u32 [#allocation2], 4
      %s28 = int_to_ptr.vmem [resolvable:$true] %s27
      %33 = dma.hbm_to_vmem [thread:$0]  %s1, 73728, %s28, [#allocation3], 128, 128, 8
    $region9: #{fwd.1} parent=1 // pred_fallthru
      _
    // Predicated region
    $region10: #{fwd.1} parent=1 // pred_check
      _
    $region11: #{fwd.1} parent=1 // pred_check_branch
      %35 = sbr.rel (0) target = $region13
    $region12: #{fwd.1} parent=1 // pred_region
      %s37 = ssub.s32 16, 16
      %38 = vsyncadd [#allocation6], %s37
      %s40 = sshll.u32 [#allocation5], 4
      %s41 = int_to_ptr.vmem [resolvable:$true] %s40
      %43 = dma.hbm_to_vmem [thread:$0]  %s2, 16, %s41, [#allocation6]
    $region13: #{fwd.1} parent=1 // pred_fallthru
      _
    // Predicated region
    $region14: #{fwd.1} parent=1 // pred_check
      _
    $region15: #{fwd.1} parent=1 // pred_check_branch
      %45 = sbr.rel (0) target = $region17
    $region16: #{fwd.1} parent=1 // pred_region
      %s47 = ssub.s32 16, 16
      %48 = vsyncadd [#allocation6], %s47
      %s50 = sshll.u32 [#allocation7], 4
      %s51 = int_to_ptr.vmem [resolvable:$true] %s50
      %53 = dma.hbm_to_vmem [thread:$0]  %s3, 16, %s51, [#allocation6]
    $region17: #{fwd.1} parent=1 // pred_fallthru
      _
    // Predicated region
    $region18: #{fwd.1} parent=1 // pred_check
      _
    $region19: #{fwd.1} parent=1 // pred_check_branch
      %55 = sbr.rel (0) target = $region21
    $region20: #{fwd.1} parent=1 // pred_region
      %s57 = ssub.s32 16, 16
      %58 = vsyncadd [#allocation9], %s57
      %s60 = sshll.u32 [#allocation8], 4
      %s61 = int_to_ptr.vmem [resolvable:$true] %s60
      %63 = dma.hbm_to_vmem [thread:$0]  %s4, 16, %s61, [#allocation9]
    $region21: #{fwd.1} parent=1 // pred_fallthru
      _
    // Predicated region
    $region22: #{fwd.1} parent=1 // pred_check
      _
    $region23: #{fwd.1} parent=1 // pred_check_branch
      %65 = sbr.rel (0) target = $region25
    $region24: #{fwd.1} parent=1 // pred_region
      %s67 = ssub.s32 2048, 2048
      %68 = vsyncadd [#allocation9], %s67
      %s69 = sshll.u32 [#allocation10], 4
      %s70 = int_to_ptr.vmem [resolvable:$true] %s69
      %75 = dma.hbm_to_vmem [thread:$0]  %s5, 2048, %s70, [#allocation9], 128, 128, 8
    $region25: #{fwd.1} parent=1 // pred_fallthru
      _
    // Predicated region
    $region26: #{fwd.1} parent=1 // pred_check
      _
    $region27: #{fwd.1} parent=1 // pred_check_branch
      %77 = sbr.rel (0) target = $region29
    $region28: #{fwd.1} parent=1 // pred_region
      %s79 = ssub.s32 16, 16
      %80 = vsyncadd [#allocation12], %s79
      %s82 = sshll.u32 [#allocation11], 4
      %s83 = int_to_ptr.vmem [resolvable:$true] %s82
      %85 = dma.hbm_to_vmem [thread:$0]  %s6, 16, %s83, [#allocation12]
    $region29: #{fwd.1} parent=1 // pred_fallthru
      _
    // Predicated region
    $region30: #{fwd.1} parent=1 // pred_check
      _
    $region31: #{fwd.1} parent=1 // pred_check_branch
      %87 = sbr.rel (0) target = $region33
    $region32: #{fwd.1} parent=1 // pred_region
      %s89 = ssub.s32 16, 16
      %90 = vsyncadd [#allocation12], %s89
      %s92 = sshll.u32 [#allocation13], 4
      %s93 = int_to_ptr.vmem [resolvable:$true] %s92
      %95 = dma.hbm_to_vmem [thread:$0]  %s7, 16, %s93, [#allocation12]
    $region33: #{fwd.1} parent=1 // pred_fallthru
      _
    // Predicated region
    $region34: #{fwd.1} parent=1 // pred_check
      _
    $region35: #{fwd.1} parent=1 // pred_check_branch
      %97 = sbr.rel (0) target = $region37
    $region36: #{fwd.1} parent=1 // pred_region
      %s99 = ssub.s32 16, 16
      %100 = vsyncadd [#allocation15], %s99
      %s102 = sshll.u32 [#allocation14], 4
      %s103 = int_to_ptr.vmem [resolvable:$true] %s102
      %105 = dma.hbm_to_vmem [thread:$0]  %s8, 16, %s103, [#allocation15]
    $region37: #{fwd.1} parent=1 // pred_fallthru
      _
    // Predicated region
    $region38: #{fwd.1} parent=1 // pred_check
      _
    $region39: #{fwd.1} parent=1 // pred_check_branch
      %107 = sbr.rel (0) target = $region41
    $region40: #{fwd.1} parent=1 // pred_region
      %108 = dma.done [#allocation3], 73728
    $region41: #{fwd.1} parent=1 // pred_fallthru
      _
    // Predicated region
    $region42: #{fwd.1} parent=1 // pred_check
      _
    $region43: #{fwd.1} parent=1 // pred_check_branch
      %110 = sbr.rel (0) target = $region45
    $region44: #{fwd.1} parent=1 // pred_region
      %111 = dma.done [#allocation6], 16
    $region45: #{fwd.1} parent=1 // pred_fallthru
      _
    // Predicated region
    $region46: #{fwd.1} parent=1 // pred_check
      _
    $region47: #{fwd.1} parent=1 // pred_check_branch
      %113 = sbr.rel (0) target = $region49
    $region48: #{fwd.1} parent=1 // pred_region
      %114 = dma.done [#allocation6], 16
    $region49: #{fwd.1} parent=1 // pred_fallthru
      _
    // Predicated region
    $region50: #{fwd.1} parent=1 // pred_check
      _
    $region51: #{fwd.1} parent=1 // pred_check_branch
      %116 = sbr.rel (0) target = $region53
    $region52: #{fwd.1} parent=1 // pred_region
      %117 = dma.done [#allocation9], 16
    $region53: #{fwd.1} parent=1 // pred_fallthru
      _
    // Predicated region
    $region54: #{fwd.1} parent=1 // pred_check
      _
    $region55: #{fwd.1} parent=1 // pred_check_branch
      %119 = sbr.rel (0) target = $region57
    $region56: #{fwd.1} parent=1 // pred_region
      %120 = dma.done [#allocation9], 2048
    $region57: #{fwd.1} parent=1 // pred_fallthru
      _
    // Predicated region
    $region58: #{fwd.1} parent=1 // pred_check
      _
    $region59: #{fwd.1} parent=1 // pred_check_branch
      %122 = sbr.rel (0) target = $region61
    $region60: #{fwd.1} parent=1 // pred_region
      %123 = dma.done [#allocation12], 16
    $region61: #{fwd.1} parent=1 // pred_fallthru
      _
    // Predicated region
    $region62: #{fwd.1} parent=1 // pred_check
      _
    $region63: #{fwd.1} parent=1 // pred_check_branch
      %125 = sbr.rel (0) target = $region65
    $region64: #{fwd.1} parent=1 // pred_region
      %126 = dma.done [#allocation12], 16
    $region65: #{fwd.1} parent=1 // pred_fallthru
      _
    // Predicated region
    $region66: #{fwd.1} parent=1 // pred_check
      _
    $region67: #{fwd.1} parent=1 // pred_check_branch
      %128 = sbr.rel (0) target = $region69
    $region68: #{fwd.1} parent=1 // pred_region
      %129 = dma.done [#allocation15], 16
    $region69: #{fwd.1} parent=1 // pred_fallthru
      _
    %v130 = vld [vmem:[%s0] sm:$0xff]
    %v131 = vld [vmem:[%s0 + $0x8] sm:$0xff]
    %v132 = vld [vmem:[%s0 + $0x10] sm:$0xff]
    %v133 = vld [vmem:[%s0 + $0x18] sm:$0xff]
    %v134 = vld [vmem:[%s0 + $0x20] sm:$0xff]
    %v135 = vld [vmem:[%s0 + $0x28] sm:$0xff]
    %v136 = vld [vmem:[%s0 + $0x30] sm:$0xff]
    %v137 = vld [vmem:[%s0 + $0x38] sm:$0xff]
    %v138 = vld [vmem:[%s0 + $0x40] sm:$0xff]
    %v139 = vld [vmem:[%s0 + $0x48] sm:$0xff]
    %v140 = vld [vmem:[%s0 + $0x50] sm:$0xff]
    %v141 = vld [vmem:[%s0 + $0x58] sm:$0xff]
    %v142 = vld [vmem:[%s0 + $0x60] sm:$0xff]
    %v143 = vld [vmem:[%s0 + $0x68] sm:$0xff]
    %v144 = vld [vmem:[%s0 + $0x70] sm:$0xff]
    %v145 = vld [vmem:[%s0 + $0x78] sm:$0xff]
    %v146 = vld [vmem:[%s0 + $0x80] sm:$0xff]
    %v147 = vld [vmem:[%s0 + $0x88] sm:$0xff]
    %v148 = vld [vmem:[%s0 + $0x90] sm:$0xff]
    %v149 = vld [vmem:[%s0 + $0x98] sm:$0xff]
    %v150 = vld [vmem:[%s0 + $0xa0] sm:$0xff]
    %v151 = vld [vmem:[%s0 + $0xa8] sm:$0xff]
    %v152 = vld [vmem:[%s0 + $0xb0] sm:$0xff]
    %v153 = vld [vmem:[%s0 + $0xb8] sm:$0xff]
    %v154 = vld [vmem:[%s0 + $0xc0] sm:$0xff]
    %v155 = vld [vmem:[%s0 + $0xc8] sm:$0xff]
    %v156 = vld [vmem:[%s0 + $0xd0] sm:$0xff]
    %v157 = vld [vmem:[%s0 + $0xd8] sm:$0xff]
    %v158 = vld [vmem:[%s0 + $0xe0] sm:$0xff]
    %v159 = vld [vmem:[%s0 + $0xe8] sm:$0xff]
    %v160 = vld [vmem:[%s0 + $0xf0] sm:$0xff]
    %v161 = vld [vmem:[%s0 + $0xf8] sm:$0xff]
    %v162 = vld [vmem:[%s0 + $0x100] sm:$0xff]
    %v163 = vld [vmem:[%s0 + $0x108] sm:$0xff]
    %v164 = vld [vmem:[%s0 + $0x110] sm:$0xff]
    %v165 = vld [vmem:[%s0 + $0x118] sm:$0xff]
    %v166 = vld [vmem:[#allocation2] sm:$0xff]
    %v167 = vld [vmem:[#allocation2 + $0x8] sm:$0xff]
    %v168 = vld [vmem:[#allocation2 + $0x10] sm:$0xff]
    %v169 = vld [vmem:[#allocation2 + $0x18] sm:$0xff]
    %v170 = vld [vmem:[#allocation2 + $0x20] sm:$0xff]
    %v171 = vld [vmem:[#allocation2 + $0x28] sm:$0xff]
    %v172 = vld [vmem:[#allocation2 + $0x30] sm:$0xff]
    %v173 = vld [vmem:[#allocation2 + $0x38] sm:$0xff]
    %v174 = vld [vmem:[#allocation2 + $0x40] sm:$0xff]
    %v175 = vld [vmem:[#allocation2 + $0x48] sm:$0xff]
    %v176 = vld [vmem:[#allocation2 + $0x50] sm:$0xff]
    %v177 = vld [vmem:[#allocation2 + $0x58] sm:$0xff]
    %v178 = vld [vmem:[#allocation2 + $0x60] sm:$0xff]
    %v179 = vld [vmem:[#allocation2 + $0x68] sm:$0xff]
    %v180 = vld [vmem:[#allocation2 + $0x70] sm:$0xff]
    %v181 = vld [vmem:[#allocation2 + $0x78] sm:$0xff]
    %v182 = vld [vmem:[#allocation2 + $0x80] sm:$0xff]
    %v183 = vld [vmem:[#allocation2 + $0x88] sm:$0xff]
    %v184 = vld [vmem:[#allocation2 + $0x90] sm:$0xff]
    %v185 = vld [vmem:[#allocation2 + $0x98] sm:$0xff]
    %v186 = vld [vmem:[#allocation2 + $0xa0] sm:$0xff]
    %v187 = vld [vmem:[#allocation2 + $0xa8] sm:$0xff]
    %v188 = vld [vmem:[#allocation2 + $0xb0] sm:$0xff]
    %v189 = vld [vmem:[#allocation2 + $0xb8] sm:$0xff]
    %v190 = vld [vmem:[#allocation2 + $0xc0] sm:$0xff]
    %v191 = vld [vmem:[#allocation2 + $0xc8] sm:$0xff]
    %v192 = vld [vmem:[#allocation2 + $0xd0] sm:$0xff]
    %v193 = vld [vmem:[#allocation2 + $0xd8] sm:$0xff]
    %v194 = vld [vmem:[#allocation2 + $0xe0] sm:$0xff]
    %v195 = vld [vmem:[#allocation2 + $0xe8] sm:$0xff]
    %v196 = vld [vmem:[#allocation2 + $0xf0] sm:$0xff]
    %v197 = vld [vmem:[#allocation2 + $0xf8] sm:$0xff]
    %v198 = vld [vmem:[#allocation2 + $0x100] sm:$0xff]
    %v199 = vld [vmem:[#allocation2 + $0x108] sm:$0xff]
    %v200 = vld [vmem:[#allocation2 + $0x110] sm:$0xff]
    %v201 = vld [vmem:[#allocation2 + $0x118] sm:$0xff]
    %v202 = vld [vmem:[#allocation2 + $0x120] sm:$0xff]
    %v203 = vld [vmem:[#allocation2 + $0x128] sm:$0xff]
    %v204 = vld [vmem:[#allocation2 + $0x130] sm:$0xff]
    %v205 = vld [vmem:[#allocation2 + $0x138] sm:$0xff]
    %v206 = vld [vmem:[#allocation2 + $0x140] sm:$0xff]
    %v207 = vld [vmem:[#allocation2 + $0x148] sm:$0xff]
    %v208 = vld [vmem:[#allocation2 + $0x150] sm:$0xff]
    %v209 = vld [vmem:[#allocation2 + $0x158] sm:$0xff]
    %v210 = vld [vmem:[#allocation2 + $0x160] sm:$0xff]
    %v211 = vld [vmem:[#allocation2 + $0x168] sm:$0xff]
    %v212 = vld [vmem:[#allocation2 + $0x170] sm:$0xff]
    %v213 = vld [vmem:[#allocation2 + $0x178] sm:$0xff]
    %v214 = vld [vmem:[#allocation2 + $0x180] sm:$0xff]
    %v215 = vld [vmem:[#allocation2 + $0x188] sm:$0xff]
    %v216 = vld [vmem:[#allocation2 + $0x190] sm:$0xff]
    %v217 = vld [vmem:[#allocation2 + $0x198] sm:$0xff]
    %v218 = vld [vmem:[#allocation2 + $0x1a0] sm:$0xff]
    %v219 = vld [vmem:[#allocation2 + $0x1a8] sm:$0xff]
    %v220 = vld [vmem:[#allocation2 + $0x1b0] sm:$0xff]
    %v221 = vld [vmem:[#allocation2 + $0x1b8] sm:$0xff]
    %v222 = vld [vmem:[#allocation2 + $0x1c0] sm:$0xff]
    %v223 = vld [vmem:[#allocation2 + $0x1c8] sm:$0xff]
    %v224 = vld [vmem:[#allocation2 + $0x1d0] sm:$0xff]
    %v225 = vld [vmem:[#allocation2 + $0x1d8] sm:$0xff]
    %v226 = vld [vmem:[#allocation2 + $0x1e0] sm:$0xff]
    %v227 = vld [vmem:[#allocation2 + $0x1e8] sm:$0xff]
    %v228 = vld [vmem:[#allocation2 + $0x1f0] sm:$0xff]
    %v229 = vld [vmem:[#allocation2 + $0x1f8] sm:$0xff]
    %v230 = vld [vmem:[#allocation2 + $0x200] sm:$0xff]
    %v231 = vld [vmem:[#allocation2 + $0x208] sm:$0xff]
    %v232 = vld [vmem:[#allocation2 + $0x210] sm:$0xff]
    %v233 = vld [vmem:[#allocation2 + $0x218] sm:$0xff]
    %v234 = vld [vmem:[#allocation2 + $0x220] sm:$0xff]
    %v235 = vld [vmem:[#allocation2 + $0x228] sm:$0xff]
    %v236 = vld [vmem:[#allocation2 + $0x230] sm:$0xff]
    %v237 = vld [vmem:[#allocation2 + $0x238] sm:$0xff]
    %v238 = vld [vmem:[#allocation2 + $0x240] sm:$0xff]
    %v239 = vld [vmem:[#allocation2 + $0x248] sm:$0xff]
    %v240 = vld [vmem:[#allocation2 + $0x250] sm:$0xff]
    %v241 = vld [vmem:[#allocation2 + $0x258] sm:$0xff]
    %v242 = vld [vmem:[#allocation2 + $0x260] sm:$0xff]
    %v243 = vld [vmem:[#allocation2 + $0x268] sm:$0xff]
    %v244 = vld [vmem:[#allocation2 + $0x270] sm:$0xff]
    %v245 = vld [vmem:[#allocation2 + $0x278] sm:$0xff]
    %v246 = vld [vmem:[#allocation2 + $0x280] sm:$0xff]
    %v247 = vld [vmem:[#allocation2 + $0x288] sm:$0xff]
    %v248 = vld [vmem:[#allocation2 + $0x290] sm:$0xff]
    %v249 = vld [vmem:[#allocation2 + $0x298] sm:$0xff]
    %v250 = vld [vmem:[#allocation2 + $0x2a0] sm:$0xff]
    %v251 = vld [vmem:[#allocation2 + $0x2a8] sm:$0xff]
    %v252 = vld [vmem:[#allocation2 + $0x2b0] sm:$0xff]
    %v253 = vld [vmem:[#allocation2 + $0x2b8] sm:$0xff]
    %v254 = vld [vmem:[#allocation2 + $0x2c0] sm:$0xff]
    %v255 = vld [vmem:[#allocation2 + $0x2c8] sm:$0xff]
    %v256 = vld [vmem:[#allocation2 + $0x2d0] sm:$0xff]
    %v257 = vld [vmem:[#allocation2 + $0x2d8] sm:$0xff]
    %v258 = vld [vmem:[#allocation2 + $0x2e0] sm:$0xff]
    %v259 = vld [vmem:[#allocation2 + $0x2e8] sm:$0xff]
    %v260 = vld [vmem:[#allocation2 + $0x2f0] sm:$0xff]
    %v261 = vld [vmem:[#allocation2 + $0x2f8] sm:$0xff]
    %v262 = vld [vmem:[#allocation2 + $0x300] sm:$0xff]
    %v263 = vld [vmem:[#allocation2 + $0x308] sm:$0xff]
    %v264 = vld [vmem:[#allocation2 + $0x310] sm:$0xff]
    %v265 = vld [vmem:[#allocation2 + $0x318] sm:$0xff]
    %v266 = vld [vmem:[#allocation2 + $0x320] sm:$0xff]
    %v267 = vld [vmem:[#allocation2 + $0x328] sm:$0xff]
    %v268 = vld [vmem:[#allocation2 + $0x330] sm:$0xff]
    %v269 = vld [vmem:[#allocation2 + $0x338] sm:$0xff]
    %v270 = vld [vmem:[#allocation2 + $0x340] sm:$0xff]
    %v271 = vld [vmem:[#allocation2 + $0x348] sm:$0xff]
    %v272 = vld [vmem:[#allocation2 + $0x350] sm:$0xff]
    %v273 = vld [vmem:[#allocation2 + $0x358] sm:$0xff]
    %v274 = vld [vmem:[#allocation2 + $0x360] sm:$0xff]
    %v275 = vld [vmem:[#allocation2 + $0x368] sm:$0xff]
    %v276 = vld [vmem:[#allocation2 + $0x370] sm:$0xff]
    %v277 = vld [vmem:[#allocation2 + $0x378] sm:$0xff]
    %v278 = vld [vmem:[#allocation2 + $0x380] sm:$0xff]
    %v279 = vld [vmem:[#allocation2 + $0x388] sm:$0xff]
    %v280 = vld [vmem:[#allocation2 + $0x390] sm:$0xff]
    %v281 = vld [vmem:[#allocation2 + $0x398] sm:$0xff]
    %v282 = vld [vmem:[#allocation2 + $0x3a0] sm:$0xff]
    %v283 = vld [vmem:[#allocation2 + $0x3a8] sm:$0xff]
    %v284 = vld [vmem:[#allocation2 + $0x3b0] sm:$0xff]
    %v285 = vld [vmem:[#allocation2 + $0x3b8] sm:$0xff]
    %v286 = vld [vmem:[#allocation2 + $0x3c0] sm:$0xff]
    %v287 = vld [vmem:[#allocation2 + $0x3c8] sm:$0xff]
    %v288 = vld [vmem:[#allocation2 + $0x3d0] sm:$0xff]
    %v289 = vld [vmem:[#allocation2 + $0x3d8] sm:$0xff]
    %v290 = vld [vmem:[#allocation2 + $0x3e0] sm:$0xff]
    %v291 = vld [vmem:[#allocation2 + $0x3e8] sm:$0xff]
    %v292 = vld [vmem:[#allocation2 + $0x3f0] sm:$0xff]
    %v293 = vld [vmem:[#allocation2 + $0x3f8] sm:$0xff]
    %v294 = vld [vmem:[#allocation2 + $0x400] sm:$0xff]
    %v295 = vld [vmem:[#allocation2 + $0x408] sm:$0xff]
    %v296 = vld [vmem:[#allocation2 + $0x410] sm:$0xff]
    %v297 = vld [vmem:[#allocation2 + $0x418] sm:$0xff]
    %v298 = vld [vmem:[#allocation2 + $0x420] sm:$0xff]
    %v299 = vld [vmem:[#allocation2 + $0x428] sm:$0xff]
    %v300 = vld [vmem:[#allocation2 + $0x430] sm:$0xff]
    %v301 = vld [vmem:[#allocation2 + $0x438] sm:$0xff]
    %v302 = vld [vmem:[#allocation2 + $0x440] sm:$0xff]
    %v303 = vld [vmem:[#allocation2 + $0x448] sm:$0xff]
    %v304 = vld [vmem:[#allocation2 + $0x450] sm:$0xff]
    %v305 = vld [vmem:[#allocation2 + $0x458] sm:$0xff]
    %v306 = vld [vmem:[#allocation2 + $0x460] sm:$0xff]
    %v307 = vld [vmem:[#allocation2 + $0x468] sm:$0xff]
    %v308 = vld [vmem:[#allocation2 + $0x470] sm:$0xff]
    %v309 = vld [vmem:[#allocation2 + $0x478] sm:$0xff]
    %v310 = vld [vmem:[#allocation2 + $0x480] sm:$0xff]
    %v311 = vld [vmem:[#allocation2 + $0x488] sm:$0xff]
    %v312 = vld [vmem:[#allocation2 + $0x490] sm:$0xff]
    %v313 = vld [vmem:[#allocation2 + $0x498] sm:$0xff]
    %v314 = vld [vmem:[#allocation2 + $0x4a0] sm:$0xff]
    %v315 = vld [vmem:[#allocation2 + $0x4a8] sm:$0xff]
    %v316 = vld [vmem:[#allocation2 + $0x4b0] sm:$0xff]
    %v317 = vld [vmem:[#allocation2 + $0x4b8] sm:$0xff]
    %v318 = vld [vmem:[#allocation2 + $0x4c0] sm:$0xff]
    %v319 = vld [vmem:[#allocation2 + $0x4c8] sm:$0xff]
    %v320 = vld [vmem:[#allocation2 + $0x4d0] sm:$0xff]
    %v321 = vld [vmem:[#allocation2 + $0x4d8] sm:$0xff]
    %v322 = vld [vmem:[#allocation2 + $0x4e0] sm:$0xff]
    %v323 = vld [vmem:[#allocation2 + $0x4e8] sm:$0xff]
    %v324 = vld [vmem:[#allocation2 + $0x4f0] sm:$0xff]
    %v325 = vld [vmem:[#allocation2 + $0x4f8] sm:$0xff]
    %v326 = vld [vmem:[#allocation2 + $0x500] sm:$0xff]
    %v327 = vld [vmem:[#allocation2 + $0x508] sm:$0xff]
    %v328 = vld [vmem:[#allocation2 + $0x510] sm:$0xff]
    %v329 = vld [vmem:[#allocation2 + $0x518] sm:$0xff]
    %v330 = vld [vmem:[#allocation2 + $0x520] sm:$0xff]
    %v331 = vld [vmem:[#allocation2 + $0x528] sm:$0xff]
    %v332 = vld [vmem:[#allocation2 + $0x530] sm:$0xff]
    %v333 = vld [vmem:[#allocation2 + $0x538] sm:$0xff]
    %v334 = vld [vmem:[#allocation2 + $0x540] sm:$0xff]
    %v335 = vld [vmem:[#allocation2 + $0x548] sm:$0xff]
    %v336 = vld [vmem:[#allocation2 + $0x550] sm:$0xff]
    %v337 = vld [vmem:[#allocation2 + $0x558] sm:$0xff]
    %v338 = vld [vmem:[#allocation2 + $0x560] sm:$0xff]
    %v339 = vld [vmem:[#allocation2 + $0x568] sm:$0xff]
    %v340 = vld [vmem:[#allocation2 + $0x570] sm:$0xff]
    %v341 = vld [vmem:[#allocation2 + $0x578] sm:$0xff]
    %v342 = vld [vmem:[#allocation2 + $0x580] sm:$0xff]
    %v343 = vld [vmem:[#allocation2 + $0x588] sm:$0xff]
    %v344 = vld [vmem:[#allocation2 + $0x590] sm:$0xff]
    %v345 = vld [vmem:[#allocation2 + $0x598] sm:$0xff]
    %v346 = vld [vmem:[#allocation2 + $0x5a0] sm:$0xff]
    %v347 = vld [vmem:[#allocation2 + $0x5a8] sm:$0xff]
    %v348 = vld [vmem:[#allocation2 + $0x5b0] sm:$0xff]
    %v349 = vld [vmem:[#allocation2 + $0x5b8] sm:$0xff]
    %v350 = vld [vmem:[#allocation2 + $0x5c0] sm:$0xff]
    %v351 = vld [vmem:[#allocation2 + $0x5c8] sm:$0xff]
    %v352 = vld [vmem:[#allocation2 + $0x5d0] sm:$0xff]
    %v353 = vld [vmem:[#allocation2 + $0x5d8] sm:$0xff]
    %v354 = vld [vmem:[#allocation2 + $0x5e0] sm:$0xff]
    %v355 = vld [vmem:[#allocation2 + $0x5e8] sm:$0xff]
    %v356 = vld [vmem:[#allocation2 + $0x5f0] sm:$0xff]
    %v357 = vld [vmem:[#allocation2 + $0x5f8] sm:$0xff]
    %v358 = vld [vmem:[#allocation2 + $0x600] sm:$0xff]
    %v359 = vld [vmem:[#allocation2 + $0x608] sm:$0xff]
    %v360 = vld [vmem:[#allocation2 + $0x610] sm:$0xff]
    %v361 = vld [vmem:[#allocation2 + $0x618] sm:$0xff]
    %v362 = vld [vmem:[#allocation2 + $0x620] sm:$0xff]
    %v363 = vld [vmem:[#allocation2 + $0x628] sm:$0xff]
    %v364 = vld [vmem:[#allocation2 + $0x630] sm:$0xff]
    %v365 = vld [vmem:[#allocation2 + $0x638] sm:$0xff]
    %v366 = vld [vmem:[#allocation2 + $0x640] sm:$0xff]
    %v367 = vld [vmem:[#allocation2 + $0x648] sm:$0xff]
    %v368 = vld [vmem:[#allocation2 + $0x650] sm:$0xff]
    %v369 = vld [vmem:[#allocation2 + $0x658] sm:$0xff]
    %v370 = vld [vmem:[#allocation2 + $0x660] sm:$0xff]
    %v371 = vld [vmem:[#allocation2 + $0x668] sm:$0xff]
    %v372 = vld [vmem:[#allocation2 + $0x670] sm:$0xff]
    %v373 = vld [vmem:[#allocation2 + $0x678] sm:$0xff]
    %v374 = vld [vmem:[#allocation2 + $0x680] sm:$0xff]
    %v375 = vld [vmem:[#allocation2 + $0x688] sm:$0xff]
    %v376 = vld [vmem:[#allocation2 + $0x690] sm:$0xff]
    %v377 = vld [vmem:[#allocation2 + $0x698] sm:$0xff]
    %v378 = vld [vmem:[#allocation2 + $0x6a0] sm:$0xff]
    %v379 = vld [vmem:[#allocation2 + $0x6a8] sm:$0xff]
    %v380 = vld [vmem:[#allocation2 + $0x6b0] sm:$0xff]
    %v381 = vld [vmem:[#allocation2 + $0x6b8] sm:$0xff]
    %v382 = vld [vmem:[#allocation2 + $0x6c0] sm:$0xff]
    %v383 = vld [vmem:[#allocation2 + $0x6c8] sm:$0xff]
    %v384 = vld [vmem:[#allocation2 + $0x6d0] sm:$0xff]
    %v385 = vld [vmem:[#allocation2 + $0x6d8] sm:$0xff]
    %v386 = vld [vmem:[#allocation2 + $0x6e0] sm:$0xff]
    %v387 = vld [vmem:[#allocation2 + $0x6e8] sm:$0xff]
    %v388 = vld [vmem:[#allocation2 + $0x6f0] sm:$0xff]
    %v389 = vld [vmem:[#allocation2 + $0x6f8] sm:$0xff]
    %v390 = vld [vmem:[#allocation2 + $0x700] sm:$0xff]
    %v391 = vld [vmem:[#allocation2 + $0x708] sm:$0xff]
    %v392 = vld [vmem:[#allocation2 + $0x710] sm:$0xff]
    %v393 = vld [vmem:[#allocation2 + $0x718] sm:$0xff]
    %v394 = vld [vmem:[#allocation2 + $0x720] sm:$0xff]
    %v395 = vld [vmem:[#allocation2 + $0x728] sm:$0xff]
    %v396 = vld [vmem:[#allocation2 + $0x730] sm:$0xff]
    %v397 = vld [vmem:[#allocation2 + $0x738] sm:$0xff]
    %v398 = vld [vmem:[#allocation2 + $0x740] sm:$0xff]
    %v399 = vld [vmem:[#allocation2 + $0x748] sm:$0xff]
    %v400 = vld [vmem:[#allocation2 + $0x750] sm:$0xff]
    %v401 = vld [vmem:[#allocation2 + $0x758] sm:$0xff]
    %v402 = vld [vmem:[#allocation2 + $0x760] sm:$0xff]
    %v403 = vld [vmem:[#allocation2 + $0x768] sm:$0xff]
    %v404 = vld [vmem:[#allocation2 + $0x770] sm:$0xff]
    %v405 = vld [vmem:[#allocation2 + $0x778] sm:$0xff]
    %v406 = vld [vmem:[#allocation2 + $0x780] sm:$0xff]
    %v407 = vld [vmem:[#allocation2 + $0x788] sm:$0xff]
    %v408 = vld [vmem:[#allocation2 + $0x790] sm:$0xff]
    %v409 = vld [vmem:[#allocation2 + $0x798] sm:$0xff]
    %v410 = vld [vmem:[#allocation2 + $0x7a0] sm:$0xff]
    %v411 = vld [vmem:[#allocation2 + $0x7a8] sm:$0xff]
    %v412 = vld [vmem:[#allocation2 + $0x7b0] sm:$0xff]
    %v413 = vld [vmem:[#allocation2 + $0x7b8] sm:$0xff]
    %v414 = vld [vmem:[#allocation2 + $0x7c0] sm:$0xff]
    %v415 = vld [vmem:[#allocation2 + $0x7c8] sm:$0xff]
    %v416 = vld [vmem:[#allocation2 + $0x7d0] sm:$0xff]
    %v417 = vld [vmem:[#allocation2 + $0x7d8] sm:$0xff]
    %v418 = vld [vmem:[#allocation2 + $0x7e0] sm:$0xff]
    %v419 = vld [vmem:[#allocation2 + $0x7e8] sm:$0xff]
    %v420 = vld [vmem:[#allocation2 + $0x7f0] sm:$0xff]
    %v421 = vld [vmem:[#allocation2 + $0x7f8] sm:$0xff]
    %v422 = vld [vmem:[#allocation2 + $0x800] sm:$0xff]
    %v423 = vld [vmem:[#allocation2 + $0x808] sm:$0xff]
    %v424 = vld [vmem:[#allocation2 + $0x810] sm:$0xff]
    %v425 = vld [vmem:[#allocation2 + $0x818] sm:$0xff]
    %v426 = vld [vmem:[#allocation2 + $0x820] sm:$0xff]
    %v427 = vld [vmem:[#allocation2 + $0x828] sm:$0xff]
    %v428 = vld [vmem:[#allocation2 + $0x830] sm:$0xff]
    %v429 = vld [vmem:[#allocation2 + $0x838] sm:$0xff]
    %v430 = vld [vmem:[#allocation2 + $0x840] sm:$0xff]
    %v431 = vld [vmem:[#allocation2 + $0x848] sm:$0xff]
    %v432 = vld [vmem:[#allocation2 + $0x850] sm:$0xff]
    %v433 = vld [vmem:[#allocation2 + $0x858] sm:$0xff]
    %v434 = vld [vmem:[#allocation2 + $0x860] sm:$0xff]
    %v435 = vld [vmem:[#allocation2 + $0x868] sm:$0xff]
    %v436 = vld [vmem:[#allocation2 + $0x870] sm:$0xff]
    %v437 = vld [vmem:[#allocation2 + $0x878] sm:$0xff]
    %v438 = vld [vmem:[#allocation2 + $0x880] sm:$0xff]
    %v439 = vld [vmem:[#allocation2 + $0x888] sm:$0xff]
    %v440 = vld [vmem:[#allocation2 + $0x890] sm:$0xff]
    %v441 = vld [vmem:[#allocation2 + $0x898] sm:$0xff]
    %v442 = vld [vmem:[#allocation2 + $0x8a0] sm:$0xff]
    %v443 = vld [vmem:[#allocation2 + $0x8a8] sm:$0xff]
    %v444 = vld [vmem:[#allocation2 + $0x8b0] sm:$0xff]
    %v445 = vld [vmem:[#allocation2 + $0x8b8] sm:$0xff]
    %v446 = vld [vmem:[#allocation2 + $0x8c0] sm:$0xff]
    %v447 = vld [vmem:[#allocation2 + $0x8c8] sm:$0xff]
    %v448 = vld [vmem:[#allocation2 + $0x8d0] sm:$0xff]
    %v449 = vld [vmem:[#allocation2 + $0x8d8] sm:$0xff]
    %v450 = vld [vmem:[#allocation2 + $0x8e0] sm:$0xff]
    %v451 = vld [vmem:[#allocation2 + $0x8e8] sm:$0xff]
    %v452 = vld [vmem:[#allocation2 + $0x8f0] sm:$0xff]
    %v453 = vld [vmem:[#allocation2 + $0x8f8] sm:$0xff]
    %v454 = vld [vmem:[#allocation2 + $0x900] sm:$0xff]
    %v455 = vld [vmem:[#allocation2 + $0x908] sm:$0xff]
    %v456 = vld [vmem:[#allocation2 + $0x910] sm:$0xff]
    %v457 = vld [vmem:[#allocation2 + $0x918] sm:$0xff]
    %v458 = vld [vmem:[#allocation2 + $0x920] sm:$0xff]
    %v459 = vld [vmem:[#allocation2 + $0x928] sm:$0xff]
    %v460 = vld [vmem:[#allocation2 + $0x930] sm:$0xff]
    %v461 = vld [vmem:[#allocation2 + $0x938] sm:$0xff]
    %v462 = vld [vmem:[#allocation2 + $0x940] sm:$0xff]
    %v463 = vld [vmem:[#allocation2 + $0x948] sm:$0xff]
    %v464 = vld [vmem:[#allocation2 + $0x950] sm:$0xff]
    %v465 = vld [vmem:[#allocation2 + $0x958] sm:$0xff]
    %v466 = vld [vmem:[#allocation2 + $0x960] sm:$0xff]
    %v467 = vld [vmem:[#allocation2 + $0x968] sm:$0xff]
    %v468 = vld [vmem:[#allocation2 + $0x970] sm:$0xff]
    %v469 = vld [vmem:[#allocation2 + $0x978] sm:$0xff]
    %v470 = vld [vmem:[#allocation2 + $0x980] sm:$0xff]
    %v471 = vld [vmem:[#allocation2 + $0x988] sm:$0xff]
    %v472 = vld [vmem:[#allocation2 + $0x990] sm:$0xff]
    %v473 = vld [vmem:[#allocation2 + $0x998] sm:$0xff]
    %v474 = vld [vmem:[#allocation2 + $0x9a0] sm:$0xff]
    %v475 = vld [vmem:[#allocation2 + $0x9a8] sm:$0xff]
    %v476 = vld [vmem:[#allocation2 + $0x9b0] sm:$0xff]
    %v477 = vld [vmem:[#allocation2 + $0x9b8] sm:$0xff]
    %v478 = vld [vmem:[#allocation2 + $0x9c0] sm:$0xff]
    %v479 = vld [vmem:[#allocation2 + $0x9c8] sm:$0xff]
    %v480 = vld [vmem:[#allocation2 + $0x9d0] sm:$0xff]
    %v481 = vld [vmem:[#allocation2 + $0x9d8] sm:$0xff]
    %v482 = vld [vmem:[#allocation2 + $0x9e0] sm:$0xff]
    %v483 = vld [vmem:[#allocation2 + $0x9e8] sm:$0xff]
    %v484 = vld [vmem:[#allocation2 + $0x9f0] sm:$0xff]
    %v485 = vld [vmem:[#allocation2 + $0x9f8] sm:$0xff]
    %v486 = vld [vmem:[#allocation2 + $0xa00] sm:$0xff]
    %v487 = vld [vmem:[#allocation2 + $0xa08] sm:$0xff]
    %v488 = vld [vmem:[#allocation2 + $0xa10] sm:$0xff]
    %v489 = vld [vmem:[#allocation2 + $0xa18] sm:$0xff]
    %v490 = vld [vmem:[#allocation2 + $0xa20] sm:$0xff]
    %v491 = vld [vmem:[#allocation2 + $0xa28] sm:$0xff]
    %v492 = vld [vmem:[#allocation2 + $0xa30] sm:$0xff]
    %v493 = vld [vmem:[#allocation2 + $0xa38] sm:$0xff]
    %v494 = vld [vmem:[#allocation2 + $0xa40] sm:$0xff]
    %v495 = vld [vmem:[#allocation2 + $0xa48] sm:$0xff]
    %v496 = vld [vmem:[#allocation2 + $0xa50] sm:$0xff]
    %v497 = vld [vmem:[#allocation2 + $0xa58] sm:$0xff]
    %v498 = vld [vmem:[#allocation2 + $0xa60] sm:$0xff]
    %v499 = vld [vmem:[#allocation2 + $0xa68] sm:$0xff]
    %v500 = vld [vmem:[#allocation2 + $0xa70] sm:$0xff]
    %v501 = vld [vmem:[#allocation2 + $0xa78] sm:$0xff]
    %v502 = vld [vmem:[#allocation2 + $0xa80] sm:$0xff]
    %v503 = vld [vmem:[#allocation2 + $0xa88] sm:$0xff]
    %v504 = vld [vmem:[#allocation2 + $0xa90] sm:$0xff]
    %v505 = vld [vmem:[#allocation2 + $0xa98] sm:$0xff]
    %v506 = vld [vmem:[#allocation2 + $0xaa0] sm:$0xff]
    %v507 = vld [vmem:[#allocation2 + $0xaa8] sm:$0xff]
    %v508 = vld [vmem:[#allocation2 + $0xab0] sm:$0xff]
    %v509 = vld [vmem:[#allocation2 + $0xab8] sm:$0xff]
    %v510 = vld [vmem:[#allocation2 + $0xac0] sm:$0xff]
    %v511 = vld [vmem:[#allocation2 + $0xac8] sm:$0xff]
    %v512 = vld [vmem:[#allocation2 + $0xad0] sm:$0xff]
    %v513 = vld [vmem:[#allocation2 + $0xad8] sm:$0xff]
    %v514 = vld [vmem:[#allocation2 + $0xae0] sm:$0xff]
    %v515 = vld [vmem:[#allocation2 + $0xae8] sm:$0xff]
    %v516 = vld [vmem:[#allocation2 + $0xaf0] sm:$0xff]
    %v517 = vld [vmem:[#allocation2 + $0xaf8] sm:$0xff]
    %v518 = vld [vmem:[#allocation2 + $0xb00] sm:$0xff]
    %v519 = vld [vmem:[#allocation2 + $0xb08] sm:$0xff]
    %v520 = vld [vmem:[#allocation2 + $0xb10] sm:$0xff]
    %v521 = vld [vmem:[#allocation2 + $0xb18] sm:$0xff]
    %v522 = vld [vmem:[#allocation2 + $0xb20] sm:$0xff]
    %v523 = vld [vmem:[#allocation2 + $0xb28] sm:$0xff]
    %v524 = vld [vmem:[#allocation2 + $0xb30] sm:$0xff]
    %v525 = vld [vmem:[#allocation2 + $0xb38] sm:$0xff]
    %v526 = vld [vmem:[#allocation2 + $0xb40] sm:$0xff]
    %v527 = vld [vmem:[#allocation2 + $0xb48] sm:$0xff]
    %v528 = vld [vmem:[#allocation2 + $0xb50] sm:$0xff]
    %v529 = vld [vmem:[#allocation2 + $0xb58] sm:$0xff]
    %v530 = vld [vmem:[#allocation2 + $0xb60] sm:$0xff]
    %v531 = vld [vmem:[#allocation2 + $0xb68] sm:$0xff]
    %v532 = vld [vmem:[#allocation2 + $0xb70] sm:$0xff]
    %v533 = vld [vmem:[#allocation2 + $0xb78] sm:$0xff]
    %v534 = vld [vmem:[#allocation2 + $0xb80] sm:$0xff]
    %v535 = vld [vmem:[#allocation2 + $0xb88] sm:$0xff]
    %v536 = vld [vmem:[#allocation2 + $0xb90] sm:$0xff]
    %v537 = vld [vmem:[#allocation2 + $0xb98] sm:$0xff]
    %v538 = vld [vmem:[#allocation2 + $0xba0] sm:$0xff]
    %v539 = vld [vmem:[#allocation2 + $0xba8] sm:$0xff]
    %v540 = vld [vmem:[#allocation2 + $0xbb0] sm:$0xff]
    %v541 = vld [vmem:[#allocation2 + $0xbb8] sm:$0xff]
    %v542 = vld [vmem:[#allocation2 + $0xbc0] sm:$0xff]
    %v543 = vld [vmem:[#allocation2 + $0xbc8] sm:$0xff]
    %v544 = vld [vmem:[#allocation2 + $0xbd0] sm:$0xff]
    %v545 = vld [vmem:[#allocation2 + $0xbd8] sm:$0xff]
    %v546 = vld [vmem:[#allocation2 + $0xbe0] sm:$0xff]
    %v547 = vld [vmem:[#allocation2 + $0xbe8] sm:$0xff]
    %v548 = vld [vmem:[#allocation2 + $0xbf0] sm:$0xff]
    %v549 = vld [vmem:[#allocation2 + $0xbf8] sm:$0xff]
    %v550 = vld [vmem:[#allocation2 + $0xc00] sm:$0xff]
    %v551 = vld [vmem:[#allocation2 + $0xc08] sm:$0xff]
    %v552 = vld [vmem:[#allocation2 + $0xc10] sm:$0xff]
    %v553 = vld [vmem:[#allocation2 + $0xc18] sm:$0xff]
    %v554 = vld [vmem:[#allocation2 + $0xc20] sm:$0xff]
    %v555 = vld [vmem:[#allocation2 + $0xc28] sm:$0xff]
    %v556 = vld [vmem:[#allocation2 + $0xc30] sm:$0xff]
    %v557 = vld [vmem:[#allocation2 + $0xc38] sm:$0xff]
    %v558 = vld [vmem:[#allocation2 + $0xc40] sm:$0xff]
    %v559 = vld [vmem:[#allocation2 + $0xc48] sm:$0xff]
    %v560 = vld [vmem:[#allocation2 + $0xc50] sm:$0xff]
    %v561 = vld [vmem:[#allocation2 + $0xc58] sm:$0xff]
    %v562 = vld [vmem:[#allocation2 + $0xc60] sm:$0xff]
    %v563 = vld [vmem:[#allocation2 + $0xc68] sm:$0xff]
    %v564 = vld [vmem:[#allocation2 + $0xc70] sm:$0xff]
    %v565 = vld [vmem:[#allocation2 + $0xc78] sm:$0xff]
    %v566 = vld [vmem:[#allocation2 + $0xc80] sm:$0xff]
    %v567 = vld [vmem:[#allocation2 + $0xc88] sm:$0xff]
    %v568 = vld [vmem:[#allocation2 + $0xc90] sm:$0xff]
    %v569 = vld [vmem:[#allocation2 + $0xc98] sm:$0xff]
    %v570 = vld [vmem:[#allocation2 + $0xca0] sm:$0xff]
    %v571 = vld [vmem:[#allocation2 + $0xca8] sm:$0xff]
    %v572 = vld [vmem:[#allocation2 + $0xcb0] sm:$0xff]
    %v573 = vld [vmem:[#allocation2 + $0xcb8] sm:$0xff]
    %v574 = vld [vmem:[#allocation2 + $0xcc0] sm:$0xff]
    %v575 = vld [vmem:[#allocation2 + $0xcc8] sm:$0xff]
    %v576 = vld [vmem:[#allocation2 + $0xcd0] sm:$0xff]
    %v577 = vld [vmem:[#allocation2 + $0xcd8] sm:$0xff]
    %v578 = vld [vmem:[#allocation2 + $0xce0] sm:$0xff]
    %v579 = vld [vmem:[#allocation2 + $0xce8] sm:$0xff]
    %v580 = vld [vmem:[#allocation2 + $0xcf0] sm:$0xff]
    %v581 = vld [vmem:[#allocation2 + $0xcf8] sm:$0xff]
    %v582 = vld [vmem:[#allocation2 + $0xd00] sm:$0xff]
    %v583 = vld [vmem:[#allocation2 + $0xd08] sm:$0xff]
    %v584 = vld [vmem:[#allocation2 + $0xd10] sm:$0xff]
    %v585 = vld [vmem:[#allocation2 + $0xd18] sm:$0xff]
    %v586 = vld [vmem:[#allocation2 + $0xd20] sm:$0xff]
    %v587 = vld [vmem:[#allocation2 + $0xd28] sm:$0xff]
    %v588 = vld [vmem:[#allocation2 + $0xd30] sm:$0xff]
    %v589 = vld [vmem:[#allocation2 + $0xd38] sm:$0xff]
    %v590 = vld [vmem:[#allocation2 + $0xd40] sm:$0xff]
    %v591 = vld [vmem:[#allocation2 + $0xd48] sm:$0xff]
    %v592 = vld [vmem:[#allocation2 + $0xd50] sm:$0xff]
    %v593 = vld [vmem:[#allocation2 + $0xd58] sm:$0xff]
    %v594 = vld [vmem:[#allocation2 + $0xd60] sm:$0xff]
    %v595 = vld [vmem:[#allocation2 + $0xd68] sm:$0xff]
    %v596 = vld [vmem:[#allocation2 + $0xd70] sm:$0xff]
    %v597 = vld [vmem:[#allocation2 + $0xd78] sm:$0xff]
    %v598 = vld [vmem:[#allocation2 + $0xd80] sm:$0xff]
    %v599 = vld [vmem:[#allocation2 + $0xd88] sm:$0xff]
    %v600 = vld [vmem:[#allocation2 + $0xd90] sm:$0xff]
    %v601 = vld [vmem:[#allocation2 + $0xd98] sm:$0xff]
    %v602 = vld [vmem:[#allocation2 + $0xda0] sm:$0xff]
    %v603 = vld [vmem:[#allocation2 + $0xda8] sm:$0xff]
    %v604 = vld [vmem:[#allocation2 + $0xdb0] sm:$0xff]
    %v605 = vld [vmem:[#allocation2 + $0xdb8] sm:$0xff]
    %v606 = vld [vmem:[#allocation2 + $0xdc0] sm:$0xff]
    %v607 = vld [vmem:[#allocation2 + $0xdc8] sm:$0xff]
    %v608 = vld [vmem:[#allocation2 + $0xdd0] sm:$0xff]
    %v609 = vld [vmem:[#allocation2 + $0xdd8] sm:$0xff]
    %v610 = vld [vmem:[#allocation2 + $0xde0] sm:$0xff]
    %v611 = vld [vmem:[#allocation2 + $0xde8] sm:$0xff]
    %v612 = vld [vmem:[#allocation2 + $0xdf0] sm:$0xff]
    %v613 = vld [vmem:[#allocation2 + $0xdf8] sm:$0xff]
    %v614 = vld [vmem:[#allocation2 + $0xe00] sm:$0xff]
    %v615 = vld [vmem:[#allocation2 + $0xe08] sm:$0xff]
    %v616 = vld [vmem:[#allocation2 + $0xe10] sm:$0xff]
    %v617 = vld [vmem:[#allocation2 + $0xe18] sm:$0xff]
    %v618 = vld [vmem:[#allocation2 + $0xe20] sm:$0xff]
    %v619 = vld [vmem:[#allocation2 + $0xe28] sm:$0xff]
    %v620 = vld [vmem:[#allocation2 + $0xe30] sm:$0xff]
    %v621 = vld [vmem:[#allocation2 + $0xe38] sm:$0xff]
    %v622 = vld [vmem:[#allocation2 + $0xe40] sm:$0xff]
    %v623 = vld [vmem:[#allocation2 + $0xe48] sm:$0xff]
    %v624 = vld [vmem:[#allocation2 + $0xe50] sm:$0xff]
    %v625 = vld [vmem:[#allocation2 + $0xe58] sm:$0xff]
    %v626 = vld [vmem:[#allocation2 + $0xe60] sm:$0xff]
    %v627 = vld [vmem:[#allocation2 + $0xe68] sm:$0xff]
    %v628 = vld [vmem:[#allocation2 + $0xe70] sm:$0xff]
    %v629 = vld [vmem:[#allocation2 + $0xe78] sm:$0xff]
    %v630 = vld [vmem:[#allocation2 + $0xe80] sm:$0xff]
    %v631 = vld [vmem:[#allocation2 + $0xe88] sm:$0xff]
    %v632 = vld [vmem:[#allocation2 + $0xe90] sm:$0xff]
    %v633 = vld [vmem:[#allocation2 + $0xe98] sm:$0xff]
    %v634 = vld [vmem:[#allocation2 + $0xea0] sm:$0xff]
    %v635 = vld [vmem:[#allocation2 + $0xea8] sm:$0xff]
    %v636 = vld [vmem:[#allocation2 + $0xeb0] sm:$0xff]
    %v637 = vld [vmem:[#allocation2 + $0xeb8] sm:$0xff]
    %v638 = vld [vmem:[#allocation2 + $0xec0] sm:$0xff]
    %v639 = vld [vmem:[#allocation2 + $0xec8] sm:$0xff]
    %v640 = vld [vmem:[#allocation2 + $0xed0] sm:$0xff]
    %v641 = vld [vmem:[#allocation2 + $0xed8] sm:$0xff]
    %v642 = vld [vmem:[#allocation2 + $0xee0] sm:$0xff]
    %v643 = vld [vmem:[#allocation2 + $0xee8] sm:$0xff]
    %v644 = vld [vmem:[#allocation2 + $0xef0] sm:$0xff]
    %v645 = vld [vmem:[#allocation2 + $0xef8] sm:$0xff]
    %v646 = vld [vmem:[#allocation2 + $0xf00] sm:$0xff]
    %v647 = vld [vmem:[#allocation2 + $0xf08] sm:$0xff]
    %v648 = vld [vmem:[#allocation2 + $0xf10] sm:$0xff]
    %v649 = vld [vmem:[#allocation2 + $0xf18] sm:$0xff]
    %v650 = vld [vmem:[#allocation2 + $0xf20] sm:$0xff]
    %v651 = vld [vmem:[#allocation2 + $0xf28] sm:$0xff]
    %v652 = vld [vmem:[#allocation2 + $0xf30] sm:$0xff]
    %v653 = vld [vmem:[#allocation2 + $0xf38] sm:$0xff]
    %v654 = vld [vmem:[#allocation2 + $0xf40] sm:$0xff]
    %v655 = vld [vmem:[#allocation2 + $0xf48] sm:$0xff]
    %v656 = vld [vmem:[#allocation2 + $0xf50] sm:$0xff]
    %v657 = vld [vmem:[#allocation2 + $0xf58] sm:$0xff]
    %v658 = vld [vmem:[#allocation2 + $0xf60] sm:$0xff]
    %v659 = vld [vmem:[#allocation2 + $0xf68] sm:$0xff]
    %v660 = vld [vmem:[#allocation2 + $0xf70] sm:$0xff]
    %v661 = vld [vmem:[#allocation2 + $0xf78] sm:$0xff]
    %v662 = vld [vmem:[#allocation2 + $0xf80] sm:$0xff]
    %v663 = vld [vmem:[#allocation2 + $0xf88] sm:$0xff]
    %v664 = vld [vmem:[#allocation2 + $0xf90] sm:$0xff]
    %v665 = vld [vmem:[#allocation2 + $0xf98] sm:$0xff]
    %v666 = vld [vmem:[#allocation2 + $0xfa0] sm:$0xff]
    %v667 = vld [vmem:[#allocation2 + $0xfa8] sm:$0xff]
    %v668 = vld [vmem:[#allocation2 + $0xfb0] sm:$0xff]
    %v669 = vld [vmem:[#allocation2 + $0xfb8] sm:$0xff]
    %v670 = vld [vmem:[#allocation2 + $0xfc0] sm:$0xff]
    %v671 = vld [vmem:[#allocation2 + $0xfc8] sm:$0xff]
    %v672 = vld [vmem:[#allocation2 + $0xfd0] sm:$0xff]
    %v673 = vld [vmem:[#allocation2 + $0xfd8] sm:$0xff]
    %v674 = vld [vmem:[#allocation2 + $0xfe0] sm:$0xff]
    %v675 = vld [vmem:[#allocation2 + $0xfe8] sm:$0xff]
    %v676 = vld [vmem:[#allocation2 + $0xff0] sm:$0xff]
    %v677 = vld [vmem:[#allocation2 + $0xff8] sm:$0xff]
    %v678 = vld [vmem:[#allocation2 + $0x1000] sm:$0xff]
    %v679 = vld [vmem:[#allocation2 + $0x1008] sm:$0xff]
    %v680 = vld [vmem:[#allocation2 + $0x1010] sm:$0xff]
    %v681 = vld [vmem:[#allocation2 + $0x1018] sm:$0xff]
    %v682 = vld [vmem:[#allocation2 + $0x1020] sm:$0xff]
    %v683 = vld [vmem:[#allocation2 + $0x1028] sm:$0xff]
    %v684 = vld [vmem:[#allocation2 + $0x1030] sm:$0xff]
    %v685 = vld [vmem:[#allocation2 + $0x1038] sm:$0xff]
    %v686 = vld [vmem:[#allocation2 + $0x1040] sm:$0xff]
    %v687 = vld [vmem:[#allocation2 + $0x1048] sm:$0xff]
    %v688 = vld [vmem:[#allocation2 + $0x1050] sm:$0xff]
    %v689 = vld [vmem:[#allocation2 + $0x1058] sm:$0xff]
    %v690 = vld [vmem:[#allocation2 + $0x1060] sm:$0xff]
    %v691 = vld [vmem:[#allocation2 + $0x1068] sm:$0xff]
    %v692 = vld [vmem:[#allocation2 + $0x1070] sm:$0xff]
    %v693 = vld [vmem:[#allocation2 + $0x1078] sm:$0xff]
    %v694 = vld [vmem:[#allocation2 + $0x1080] sm:$0xff]
    %v695 = vld [vmem:[#allocation2 + $0x1088] sm:$0xff]
    %v696 = vld [vmem:[#allocation2 + $0x1090] sm:$0xff]
    %v697 = vld [vmem:[#allocation2 + $0x1098] sm:$0xff]
    %v698 = vld [vmem:[#allocation2 + $0x10a0] sm:$0xff]
    %v699 = vld [vmem:[#allocation2 + $0x10a8] sm:$0xff]
    %v700 = vld [vmem:[#allocation2 + $0x10b0] sm:$0xff]
    %v701 = vld [vmem:[#allocation2 + $0x10b8] sm:$0xff]
    %v702 = vld [vmem:[#allocation2 + $0x10c0] sm:$0xff]
    %v703 = vld [vmem:[#allocation2 + $0x10c8] sm:$0xff]
    %v704 = vld [vmem:[#allocation2 + $0x10d0] sm:$0xff]
    %v705 = vld [vmem:[#allocation2 + $0x10d8] sm:$0xff]
    %v706 = vld [vmem:[#allocation2 + $0x10e0] sm:$0xff]
    %v707 = vld [vmem:[#allocation2 + $0x10e8] sm:$0xff]
    %v708 = vld [vmem:[#allocation2 + $0x10f0] sm:$0xff]
    %v709 = vld [vmem:[#allocation2 + $0x10f8] sm:$0xff]
    %v710 = vld [vmem:[#allocation2 + $0x1100] sm:$0xff]
    %v711 = vld [vmem:[#allocation2 + $0x1108] sm:$0xff]
    %v712 = vld [vmem:[#allocation2 + $0x1110] sm:$0xff]
    %v713 = vld [vmem:[#allocation2 + $0x1118] sm:$0xff]
    %v714 = vld [vmem:[#allocation2 + $0x1120] sm:$0xff]
    %v715 = vld [vmem:[#allocation2 + $0x1128] sm:$0xff]
    %v716 = vld [vmem:[#allocation2 + $0x1130] sm:$0xff]
    %v717 = vld [vmem:[#allocation2 + $0x1138] sm:$0xff]
    %v718 = vld [vmem:[#allocation2 + $0x1140] sm:$0xff]
    %v719 = vld [vmem:[#allocation2 + $0x1148] sm:$0xff]
    %v720 = vld [vmem:[#allocation2 + $0x1150] sm:$0xff]
    %v721 = vld [vmem:[#allocation2 + $0x1158] sm:$0xff]
    %v722 = vld [vmem:[#allocation2 + $0x1160] sm:$0xff]
    %v723 = vld [vmem:[#allocation2 + $0x1168] sm:$0xff]
    %v724 = vld [vmem:[#allocation2 + $0x1170] sm:$0xff]
    %v725 = vld [vmem:[#allocation2 + $0x1178] sm:$0xff]
    %v726 = vld [vmem:[#allocation2 + $0x1180] sm:$0xff]
    %v727 = vld [vmem:[#allocation2 + $0x1188] sm:$0xff]
    %v728 = vld [vmem:[#allocation2 + $0x1190] sm:$0xff]
    %v729 = vld [vmem:[#allocation2 + $0x1198] sm:$0xff]
    %v730 = vld [vmem:[#allocation2 + $0x11a0] sm:$0xff]
    %v731 = vld [vmem:[#allocation2 + $0x11a8] sm:$0xff]
    %v732 = vld [vmem:[#allocation2 + $0x11b0] sm:$0xff]
    %v733 = vld [vmem:[#allocation2 + $0x11b8] sm:$0xff]
    %v734 = vld [vmem:[#allocation2 + $0x11c0] sm:$0xff]
    %v735 = vld [vmem:[#allocation2 + $0x11c8] sm:$0xff]
    %v736 = vld [vmem:[#allocation2 + $0x11d0] sm:$0xff]
    %v737 = vld [vmem:[#allocation2 + $0x11d8] sm:$0xff]
    %v738 = vld [vmem:[#allocation2 + $0x11e0] sm:$0xff]
    %v739 = vld [vmem:[#allocation2 + $0x11e8] sm:$0xff]
    %v740 = vld [vmem:[#allocation2 + $0x11f0] sm:$0xff]
    %v741 = vld [vmem:[#allocation2 + $0x11f8] sm:$0xff]
    %v742 = vld [vmem:[#allocation5] sm:$0x1]
    %v744 = vlaneseq
    %v745 = vshrl.u32 %v744, 7
    %v746 = vsub.s32 0, %v745
    %v747 = vrot.slane %v742, %v746
    %749 = vmatprep.subr.mxu0 0.0
    %750 = vmatpush1.msra.mxu0 %v181
    %751 = vmatprep.subr.mxu0 0.0
    %752 = vmatpush1.msra.mxu0 %v180
    %753 = vmatprep.subr.mxu0 0.0
    %754 = vmatpush1.msra.mxu0 %v179
    %755 = vmatprep.subr.mxu0 0.0
    %756 = vmatpush1.msra.mxu0 %v178
    %757 = vmatprep.subr.mxu0 0.0
    %758 = vmatpush1.msra.mxu0 %v177
    %759 = vmatprep.subr.mxu0 0.0
    %760 = vmatpush1.msra.mxu0 %v176
    %761 = vmatprep.subr.mxu0 0.0
    %762 = vmatpush1.msra.mxu0 %v175
    %763 = vmatprep.subr.mxu0 0.0
    %764 = vmatpush1.msra.mxu0 %v174
    %765 = vmatprep.subr.mxu0 0.0
    %766 = vmatpush1.msra.mxu0 %v173
    %767 = vmatprep.subr.mxu0 0.0
    %768 = vmatpush1.msra.mxu0 %v172
    %769 = vmatprep.subr.mxu0 0.0
    %770 = vmatpush1.msra.mxu0 %v171
    %771 = vmatprep.subr.mxu0 0.0
    %772 = vmatpush1.msra.mxu0 %v170
    %773 = vmatprep.subr.mxu0 0.0
    %774 = vmatpush1.msra.mxu0 %v169
    %775 = vmatprep.subr.mxu0 0.0
    %776 = vmatpush1.msra.mxu0 %v168
    %777 = vmatprep.subr.mxu0 0.0
    %778 = vmatpush1.msra.mxu0 %v167
    %779 = vmatprep.subr.mxu0 0.0
    %780 = vmatpush1.msra.mxu0 %v166
    %781 = vmatprep.subr.mxu0 0.0
    %782 = vmatpush2.msra.mxu0 %v197
    %783 = vmatprep.subr.mxu0 0.0
    %784 = vmatpush2.msra.mxu0 %v196
    %785 = vmatprep.subr.mxu0 0.0
    %786 = vmatpush2.msra.mxu0 %v195
    %787 = vmatprep.subr.mxu0 0.0
    %788 = vmatpush2.msra.mxu0 %v194
    %789 = vmatprep.subr.mxu0 0.0
    %790 = vmatpush2.msra.mxu0 %v193
    %791 = vmatprep.subr.mxu0 0.0
    %792 = vmatpush2.msra.mxu0 %v192
    %793 = vmatprep.subr.mxu0 0.0
    %794 = vmatpush2.msra.mxu0 %v191
    %795 = vmatprep.subr.mxu0 0.0
    %796 = vmatpush2.msra.mxu0 %v190
    %797 = vmatprep.subr.mxu0 0.0
    %798 = vmatpush2.msra.mxu0 %v189
    %799 = vmatprep.subr.mxu0 0.0
    %800 = vmatpush2.msra.mxu0 %v188
    %801 = vmatprep.subr.mxu0 0.0
    %802 = vmatpush2.msra.mxu0 %v187
    %803 = vmatprep.subr.mxu0 0.0
    %804 = vmatpush2.msra.mxu0 %v186
    %805 = vmatprep.subr.mxu0 0.0
    %806 = vmatpush2.msra.mxu0 %v185
    %807 = vmatprep.subr.mxu0 0.0
    %808 = vmatpush2.msra.mxu0 %v184
    %809 = vmatprep.subr.mxu0 0.0
    %810 = vmatpush2.msra.mxu0 %v183
    %811 = vmatprep.subr.mxu0 0.0
    %812 = vmatpush2.msra.mxu0 %v182
    %813 = vmatprep.mubr.f32.mxu0 %v131
    %814 = vmatmul.mubr.f32.gmra.mxu0 %v130
    %v815 = vpop.f32.mrf.mxu0
    %v816 = vadd.f32 %v747, %v815
    %v817 = vpop.f32.mrf.mxu0
    %818 = vdwg.mxu0
    %819 = vmatprep.subr.mxu0 0.0
    %820 = vmatpush1.msra.mxu0 %v213
    %821 = vmatprep.subr.mxu0 0.0
    %822 = vmatpush1.msra.mxu0 %v212
    %823 = vmatprep.subr.mxu0 0.0
    %824 = vmatpush1.msra.mxu0 %v211
    %825 = vmatprep.subr.mxu0 0.0
    %826 = vmatpush1.msra.mxu0 %v210
    %827 = vmatprep.subr.mxu0 0.0
    %828 = vmatpush1.msra.mxu0 %v209
    %829 = vmatprep.subr.mxu0 0.0
    %830 = vmatpush1.msra.mxu0 %v208
    %831 = vmatprep.subr.mxu0 0.0
    %832 = vmatpush1.msra.mxu0 %v207
    %833 = vmatprep.subr.mxu0 0.0
    %834 = vmatpush1.msra.mxu0 %v206
    %835 = vmatprep.subr.mxu0 0.0
    %836 = vmatpush1.msra.mxu0 %v205
    %837 = vmatprep.subr.mxu0 0.0
    %838 = vmatpush1.msra.mxu0 %v204
    %839 = vmatprep.subr.mxu0 0.0
    %840 = vmatpush1.msra.mxu0 %v203
    %841 = vmatprep.subr.mxu0 0.0
    %842 = vmatpush1.msra.mxu0 %v202
    %843 = vmatprep.subr.mxu0 0.0
    %844 = vmatpush1.msra.mxu0 %v201
    %845 = vmatprep.subr.mxu0 0.0
    %846 = vmatpush1.msra.mxu0 %v200
    %847 = vmatprep.subr.mxu0 0.0
    %848 = vmatpush1.msra.mxu0 %v199
    %849 = vmatprep.subr.mxu0 0.0
    %850 = vmatpush1.msra.mxu0 %v198
    %851 = vmatprep.subr.mxu0 0.0
    %852 = vmatpush2.msra.mxu0 %v229
    %853 = vmatprep.subr.mxu0 0.0
    %854 = vmatpush2.msra.mxu0 %v228
    %855 = vmatprep.subr.mxu0 0.0
    %856 = vmatpush2.msra.mxu0 %v227
    %857 = vmatprep.subr.mxu0 0.0
    %858 = vmatpush2.msra.mxu0 %v226
    %859 = vmatprep.subr.mxu0 0.0
    %860 = vmatpush2.msra.mxu0 %v225
    %861 = vmatprep.subr.mxu0 0.0
    %862 = vmatpush2.msra.mxu0 %v224
    %863 = vmatprep.subr.mxu0 0.0
    %864 = vmatpush2.msra.mxu0 %v223
    %865 = vmatprep.subr.mxu0 0.0
    %866 = vmatpush2.msra.mxu0 %v222
    %867 = vmatprep.subr.mxu0 0.0
    %868 = vmatpush2.msra.mxu0 %v221
    %869 = vmatprep.subr.mxu0 0.0
    %870 = vmatpush2.msra.mxu0 %v220
    %871 = vmatprep.subr.mxu0 0.0
    %872 = vmatpush2.msra.mxu0 %v219
    %873 = vmatprep.subr.mxu0 0.0
    %874 = vmatpush2.msra.mxu0 %v218
    %875 = vmatprep.subr.mxu0 0.0
    %876 = vmatpush2.msra.mxu0 %v217
    %877 = vmatprep.subr.mxu0 0.0
    %878 = vmatpush2.msra.mxu0 %v216
    %879 = vmatprep.subr.mxu0 0.0
    %880 = vmatpush2.msra.mxu0 %v215
    %881 = vmatprep.subr.mxu0 0.0
    %882 = vmatpush2.msra.mxu0 %v214
    %883 = vmatprep.mubr.f32.mxu0 %v133
    %884 = vmatmul.mubr.f32.gmra.mxu0 %v132
    %v885 = vpop.f32.mrf.mxu0
    %v886 = vadd.f32 %v816, %v885
    %v887 = vpop.f32.mrf.mxu0
    %888 = vdwg.mxu0
    %889 = vmatprep.subr.mxu0 0.0
    %890 = vmatpush1.msra.mxu0 %v245
    %891 = vmatprep.subr.mxu0 0.0
    %892 = vmatpush1.msra.mxu0 %v244
    %893 = vmatprep.subr.mxu0 0.0
    %894 = vmatpush1.msra.mxu0 %v243
    %895 = vmatprep.subr.mxu0 0.0
    %896 = vmatpush1.msra.mxu0 %v242
    %897 = vmatprep.subr.mxu0 0.0
    %898 = vmatpush1.msra.mxu0 %v241
    %899 = vmatprep.subr.mxu0 0.0
    %900 = vmatpush1.msra.mxu0 %v240
    %901 = vmatprep.subr.mxu0 0.0
    %902 = vmatpush1.msra.mxu0 %v239
    %903 = vmatprep.subr.mxu0 0.0
    %904 = vmatpush1.msra.mxu0 %v238
    %905 = vmatprep.subr.mxu0 0.0
    %906 = vmatpush1.msra.mxu0 %v237
    %907 = vmatprep.subr.mxu0 0.0
    %908 = vmatpush1.msra.mxu0 %v236
    %909 = vmatprep.subr.mxu0 0.0
    %910 = vmatpush1.msra.mxu0 %v235
    %911 = vmatprep.subr.mxu0 0.0
    %912 = vmatpush1.msra.mxu0 %v234
    %913 = vmatprep.subr.mxu0 0.0
    %914 = vmatpush1.msra.mxu0 %v233
    %915 = vmatprep.subr.mxu0 0.0
    %916 = vmatpush1.msra.mxu0 %v232
    %917 = vmatprep.subr.mxu0 0.0
    %918 = vmatpush1.msra.mxu0 %v231
    %919 = vmatprep.subr.mxu0 0.0
    %920 = vmatpush1.msra.mxu0 %v230
    %921 = vmatprep.subr.mxu0 0.0
    %922 = vmatpush2.msra.mxu0 %v261
    %923 = vmatprep.subr.mxu0 0.0
    %924 = vmatpush2.msra.mxu0 %v260
    %925 = vmatprep.subr.mxu0 0.0
    %926 = vmatpush2.msra.mxu0 %v259
    %927 = vmatprep.subr.mxu0 0.0
    %928 = vmatpush2.msra.mxu0 %v258
    %929 = vmatprep.subr.mxu0 0.0
    %930 = vmatpush2.msra.mxu0 %v257
    %931 = vmatprep.subr.mxu0 0.0
    %932 = vmatpush2.msra.mxu0 %v256
    %933 = vmatprep.subr.mxu0 0.0
    %934 = vmatpush2.msra.mxu0 %v255
    %935 = vmatprep.subr.mxu0 0.0
    %936 = vmatpush2.msra.mxu0 %v254
    %937 = vmatprep.subr.mxu0 0.0
    %938 = vmatpush2.msra.mxu0 %v253
    %939 = vmatprep.subr.mxu0 0.0
    %940 = vmatpush2.msra.mxu0 %v252
    %941 = vmatprep.subr.mxu0 0.0
    %942 = vmatpush2.msra.mxu0 %v251
    %943 = vmatprep.subr.mxu0 0.0
    %944 = vmatpush2.msra.mxu0 %v250
    %945 = vmatprep.subr.mxu0 0.0
    %946 = vmatpush2.msra.mxu0 %v249
    %947 = vmatprep.subr.mxu0 0.0
    %948 = vmatpush2.msra.mxu0 %v248
    %949 = vmatprep.subr.mxu0 0.0
    %950 = vmatpush2.msra.mxu0 %v247
    %951 = vmatprep.subr.mxu0 0.0
    %952 = vmatpush2.msra.mxu0 %v246
    %953 = vmatprep.mubr.f32.mxu0 %v135
    %954 = vmatmul.mubr.f32.gmra.mxu0 %v134
    %v955 = vpop.f32.mrf.mxu0
    %v956 = vadd.f32 %v886, %v955
    %v957 = vpop.f32.mrf.mxu0
    %958 = vdwg.mxu0
    %959 = vmatprep.subr.mxu0 0.0
    %960 = vmatpush1.msra.mxu0 %v277
    %961 = vmatprep.subr.mxu0 0.0
    %962 = vmatpush1.msra.mxu0 %v276
    %963 = vmatprep.subr.mxu0 0.0
    %964 = vmatpush1.msra.mxu0 %v275
    %965 = vmatprep.subr.mxu0 0.0
    %966 = vmatpush1.msra.mxu0 %v274
    %967 = vmatprep.subr.mxu0 0.0
    %968 = vmatpush1.msra.mxu0 %v273
    %969 = vmatprep.subr.mxu0 0.0
    %970 = vmatpush1.msra.mxu0 %v272
    %971 = vmatprep.subr.mxu0 0.0
    %972 = vmatpush1.msra.mxu0 %v271
    %973 = vmatprep.subr.mxu0 0.0
    %974 = vmatpush1.msra.mxu0 %v270
    %975 = vmatprep.subr.mxu0 0.0
    %976 = vmatpush1.msra.mxu0 %v269
    %977 = vmatprep.subr.mxu0 0.0
    %978 = vmatpush1.msra.mxu0 %v268
    %979 = vmatprep.subr.mxu0 0.0
    %980 = vmatpush1.msra.mxu0 %v267
    %981 = vmatprep.subr.mxu0 0.0
    %982 = vmatpush1.msra.mxu0 %v266
    %983 = vmatprep.subr.mxu0 0.0
    %984 = vmatpush1.msra.mxu0 %v265
    %985 = vmatprep.subr.mxu0 0.0
    %986 = vmatpush1.msra.mxu0 %v264
    %987 = vmatprep.subr.mxu0 0.0
    %988 = vmatpush1.msra.mxu0 %v263
    %989 = vmatprep.subr.mxu0 0.0
    %990 = vmatpush1.msra.mxu0 %v262
    %991 = vmatprep.subr.mxu0 0.0
    %992 = vmatpush2.msra.mxu0 %v293
    %993 = vmatprep.subr.mxu0 0.0
    %994 = vmatpush2.msra.mxu0 %v292
    %995 = vmatprep.subr.mxu0 0.0
    %996 = vmatpush2.msra.mxu0 %v291
    %997 = vmatprep.subr.mxu0 0.0
    %998 = vmatpush2.msra.mxu0 %v290
    %999 = vmatprep.subr.mxu0 0.0
    %1000 = vmatpush2.msra.mxu0 %v289
    %1001 = vmatprep.subr.mxu0 0.0
    %1002 = vmatpush2.msra.mxu0 %v288
    %1003 = vmatprep.subr.mxu0 0.0
    %1004 = vmatpush2.msra.mxu0 %v287
    %1005 = vmatprep.subr.mxu0 0.0
    %1006 = vmatpush2.msra.mxu0 %v286
    %1007 = vmatprep.subr.mxu0 0.0
    %1008 = vmatpush2.msra.mxu0 %v285
    %1009 = vmatprep.subr.mxu0 0.0
    %1010 = vmatpush2.msra.mxu0 %v284
    %1011 = vmatprep.subr.mxu0 0.0
    %1012 = vmatpush2.msra.mxu0 %v283
    %1013 = vmatprep.subr.mxu0 0.0
    %1014 = vmatpush2.msra.mxu0 %v282
    %1015 = vmatprep.subr.mxu0 0.0
    %1016 = vmatpush2.msra.mxu0 %v281
    %1017 = vmatprep.subr.mxu0 0.0
    %1018 = vmatpush2.msra.mxu0 %v280
    %1019 = vmatprep.subr.mxu0 0.0
    %1020 = vmatpush2.msra.mxu0 %v279
    %1021 = vmatprep.subr.mxu0 0.0
    %1022 = vmatpush2.msra.mxu0 %v278
    %1023 = vmatprep.mubr.f32.mxu0 %v137
    %1024 = vmatmul.mubr.f32.gmra.mxu0 %v136
    %v1025 = vpop.f32.mrf.mxu0
    %v1026 = vadd.f32 %v956, %v1025
    %v1027 = vpop.f32.mrf.mxu0
    %1028 = vdwg.mxu0
    %1029 = vmatprep.subr.mxu0 0.0
    %1030 = vmatpush1.msra.mxu0 %v309
    %1031 = vmatprep.subr.mxu0 0.0
    %1032 = vmatpush1.msra.mxu0 %v308
    %1033 = vmatprep.subr.mxu0 0.0
    %1034 = vmatpush1.msra.mxu0 %v307
    %1035 = vmatprep.subr.mxu0 0.0
    %1036 = vmatpush1.msra.mxu0 %v306
    %1037 = vmatprep.subr.mxu0 0.0
    %1038 = vmatpush1.msra.mxu0 %v305
    %1039 = vmatprep.subr.mxu0 0.0
    %1040 = vmatpush1.msra.mxu0 %v304
    %1041 = vmatprep.subr.mxu0 0.0
    %1042 = vmatpush1.msra.mxu0 %v303
    %1043 = vmatprep.subr.mxu0 0.0
    %1044 = vmatpush1.msra.mxu0 %v302
    %1045 = vmatprep.subr.mxu0 0.0
    %1046 = vmatpush1.msra.mxu0 %v301
    %1047 = vmatprep.subr.mxu0 0.0
    %1048 = vmatpush1.msra.mxu0 %v300
    %1049 = vmatprep.subr.mxu0 0.0
    %1050 = vmatpush1.msra.mxu0 %v299
    %1051 = vmatprep.subr.mxu0 0.0
    %1052 = vmatpush1.msra.mxu0 %v298
    %1053 = vmatprep.subr.mxu0 0.0
    %1054 = vmatpush1.msra.mxu0 %v297
    %1055 = vmatprep.subr.mxu0 0.0
    %1056 = vmatpush1.msra.mxu0 %v296
    %1057 = vmatprep.subr.mxu0 0.0
    %1058 = vmatpush1.msra.mxu0 %v295
    %1059 = vmatprep.subr.mxu0 0.0
    %1060 = vmatpush1.msra.mxu0 %v294
    %1061 = vmatprep.subr.mxu0 0.0
    %1062 = vmatpush2.msra.mxu0 %v325
    %1063 = vmatprep.subr.mxu0 0.0
    %1064 = vmatpush2.msra.mxu0 %v324
    %1065 = vmatprep.subr.mxu0 0.0
    %1066 = vmatpush2.msra.mxu0 %v323
    %1067 = vmatprep.subr.mxu0 0.0
    %1068 = vmatpush2.msra.mxu0 %v322
    %1069 = vmatprep.subr.mxu0 0.0
    %1070 = vmatpush2.msra.mxu0 %v321
    %1071 = vmatprep.subr.mxu0 0.0
    %1072 = vmatpush2.msra.mxu0 %v320
    %1073 = vmatprep.subr.mxu0 0.0
    %1074 = vmatpush2.msra.mxu0 %v319
    %1075 = vmatprep.subr.mxu0 0.0
    %1076 = vmatpush2.msra.mxu0 %v318
    %1077 = vmatprep.subr.mxu0 0.0
    %1078 = vmatpush2.msra.mxu0 %v317
    %1079 = vmatprep.subr.mxu0 0.0
    %1080 = vmatpush2.msra.mxu0 %v316
    %1081 = vmatprep.subr.mxu0 0.0
    %1082 = vmatpush2.msra.mxu0 %v315
    %1083 = vmatprep.subr.mxu0 0.0
    %1084 = vmatpush2.msra.mxu0 %v314
    %1085 = vmatprep.subr.mxu0 0.0
    %1086 = vmatpush2.msra.mxu0 %v313
    %1087 = vmatprep.subr.mxu0 0.0
    %1088 = vmatpush2.msra.mxu0 %v312
    %1089 = vmatprep.subr.mxu0 0.0
    %1090 = vmatpush2.msra.mxu0 %v311
    %1091 = vmatprep.subr.mxu0 0.0
    %1092 = vmatpush2.msra.mxu0 %v310
    %1093 = vmatprep.mubr.f32.mxu0 %v139
    %1094 = vmatmul.mubr.f32.gmra.mxu0 %v138
    %v1095 = vpop.f32.mrf.mxu0
    %v1096 = vadd.f32 %v1026, %v1095
    %v1097 = vpop.f32.mrf.mxu0
    %1098 = vdwg.mxu0
    %1099 = vmatprep.subr.mxu0 0.0
    %1100 = vmatpush1.msra.mxu0 %v341
    %1101 = vmatprep.subr.mxu0 0.0
    %1102 = vmatpush1.msra.mxu0 %v340
    %1103 = vmatprep.subr.mxu0 0.0
    %1104 = vmatpush1.msra.mxu0 %v339
    %1105 = vmatprep.subr.mxu0 0.0
    %1106 = vmatpush1.msra.mxu0 %v338
    %1107 = vmatprep.subr.mxu0 0.0
    %1108 = vmatpush1.msra.mxu0 %v337
    %1109 = vmatprep.subr.mxu0 0.0
    %1110 = vmatpush1.msra.mxu0 %v336
    %1111 = vmatprep.subr.mxu0 0.0
    %1112 = vmatpush1.msra.mxu0 %v335
    %1113 = vmatprep.subr.mxu0 0.0
    %1114 = vmatpush1.msra.mxu0 %v334
    %1115 = vmatprep.subr.mxu0 0.0
    %1116 = vmatpush1.msra.mxu0 %v333
    %1117 = vmatprep.subr.mxu0 0.0
    %1118 = vmatpush1.msra.mxu0 %v332
    %1119 = vmatprep.subr.mxu0 0.0
    %1120 = vmatpush1.msra.mxu0 %v331
    %1121 = vmatprep.subr.mxu0 0.0
    %1122 = vmatpush1.msra.mxu0 %v330
    %1123 = vmatprep.subr.mxu0 0.0
    %1124 = vmatpush1.msra.mxu0 %v329
    %1125 = vmatprep.subr.mxu0 0.0
    %1126 = vmatpush1.msra.mxu0 %v328
    %1127 = vmatprep.subr.mxu0 0.0
    %1128 = vmatpush1.msra.mxu0 %v327
    %1129 = vmatprep.subr.mxu0 0.0
    %1130 = vmatpush1.msra.mxu0 %v326
    %1131 = vmatprep.subr.mxu0 0.0
    %1132 = vmatpush2.msra.mxu0 %v357
    %1133 = vmatprep.subr.mxu0 0.0
    %1134 = vmatpush2.msra.mxu0 %v356
    %1135 = vmatprep.subr.mxu0 0.0
    %1136 = vmatpush2.msra.mxu0 %v355
    %1137 = vmatprep.subr.mxu0 0.0
    %1138 = vmatpush2.msra.mxu0 %v354
    %1139 = vmatprep.subr.mxu0 0.0
    %1140 = vmatpush2.msra.mxu0 %v353
    %1141 = vmatprep.subr.mxu0 0.0
    %1142 = vmatpush2.msra.mxu0 %v352
    %1143 = vmatprep.subr.mxu0 0.0
    %1144 = vmatpush2.msra.mxu0 %v351
    %1145 = vmatprep.subr.mxu0 0.0
    %1146 = vmatpush2.msra.mxu0 %v350
    %1147 = vmatprep.subr.mxu0 0.0
    %1148 = vmatpush2.msra.mxu0 %v349
    %1149 = vmatprep.subr.mxu0 0.0
    %1150 = vmatpush2.msra.mxu0 %v348
    %1151 = vmatprep.subr.mxu0 0.0
    %1152 = vmatpush2.msra.mxu0 %v347
    %1153 = vmatprep.subr.mxu0 0.0
    %1154 = vmatpush2.msra.mxu0 %v346
    %1155 = vmatprep.subr.mxu0 0.0
    %1156 = vmatpush2.msra.mxu0 %v345
    %1157 = vmatprep.subr.mxu0 0.0
    %1158 = vmatpush2.msra.mxu0 %v344
    %1159 = vmatprep.subr.mxu0 0.0
    %1160 = vmatpush2.msra.mxu0 %v343
    %1161 = vmatprep.subr.mxu0 0.0
    %1162 = vmatpush2.msra.mxu0 %v342
    %1163 = vmatprep.mubr.f32.mxu0 %v141
    %1164 = vmatmul.mubr.f32.gmra.mxu0 %v140
    %v1165 = vpop.f32.mrf.mxu0
    %v1166 = vadd.f32 %v1096, %v1165
    %v1167 = vpop.f32.mrf.mxu0
    %1168 = vdwg.mxu0
    %1169 = vmatprep.subr.mxu0 0.0
    %1170 = vmatpush1.msra.mxu0 %v373
    %1171 = vmatprep.subr.mxu0 0.0
    %1172 = vmatpush1.msra.mxu0 %v372
    %1173 = vmatprep.subr.mxu0 0.0
    %1174 = vmatpush1.msra.mxu0 %v371
    %1175 = vmatprep.subr.mxu0 0.0
    %1176 = vmatpush1.msra.mxu0 %v370
    %1177 = vmatprep.subr.mxu0 0.0
    %1178 = vmatpush1.msra.mxu0 %v369
    %1179 = vmatprep.subr.mxu0 0.0
    %1180 = vmatpush1.msra.mxu0 %v368
    %1181 = vmatprep.subr.mxu0 0.0
    %1182 = vmatpush1.msra.mxu0 %v367
    %1183 = vmatprep.subr.mxu0 0.0
    %1184 = vmatpush1.msra.mxu0 %v366
    %1185 = vmatprep.subr.mxu0 0.0
    %1186 = vmatpush1.msra.mxu0 %v365
    %1187 = vmatprep.subr.mxu0 0.0
    %1188 = vmatpush1.msra.mxu0 %v364
    %1189 = vmatprep.subr.mxu0 0.0
    %1190 = vmatpush1.msra.mxu0 %v363
    %1191 = vmatprep.subr.mxu0 0.0
    %1192 = vmatpush1.msra.mxu0 %v362
    %1193 = vmatprep.subr.mxu0 0.0
    %1194 = vmatpush1.msra.mxu0 %v361
    %1195 = vmatprep.subr.mxu0 0.0
    %1196 = vmatpush1.msra.mxu0 %v360
    %1197 = vmatprep.subr.mxu0 0.0
    %1198 = vmatpush1.msra.mxu0 %v359
    %1199 = vmatprep.subr.mxu0 0.0
    %1200 = vmatpush1.msra.mxu0 %v358
    %1201 = vmatprep.subr.mxu0 0.0
    %1202 = vmatpush2.msra.mxu0 %v389
    %1203 = vmatprep.subr.mxu0 0.0
    %1204 = vmatpush2.msra.mxu0 %v388
    %1205 = vmatprep.subr.mxu0 0.0
    %1206 = vmatpush2.msra.mxu0 %v387
    %1207 = vmatprep.subr.mxu0 0.0
    %1208 = vmatpush2.msra.mxu0 %v386
    %1209 = vmatprep.subr.mxu0 0.0
    %1210 = vmatpush2.msra.mxu0 %v385
    %1211 = vmatprep.subr.mxu0 0.0
    %1212 = vmatpush2.msra.mxu0 %v384
    %1213 = vmatprep.subr.mxu0 0.0
    %1214 = vmatpush2.msra.mxu0 %v383
    %1215 = vmatprep.subr.mxu0 0.0
    %1216 = vmatpush2.msra.mxu0 %v382
    %1217 = vmatprep.subr.mxu0 0.0
    %1218 = vmatpush2.msra.mxu0 %v381
    %1219 = vmatprep.subr.mxu0 0.0
    %1220 = vmatpush2.msra.mxu0 %v380
    %1221 = vmatprep.subr.mxu0 0.0
    %1222 = vmatpush2.msra.mxu0 %v379
    %1223 = vmatprep.subr.mxu0 0.0
    %1224 = vmatpush2.msra.mxu0 %v378
    %1225 = vmatprep.subr.mxu0 0.0
    %1226 = vmatpush2.msra.mxu0 %v377
    %1227 = vmatprep.subr.mxu0 0.0
    %1228 = vmatpush2.msra.mxu0 %v376
    %1229 = vmatprep.subr.mxu0 0.0
    %1230 = vmatpush2.msra.mxu0 %v375
    %1231 = vmatprep.subr.mxu0 0.0
    %1232 = vmatpush2.msra.mxu0 %v374
    %1233 = vmatprep.mubr.f32.mxu0 %v143
    %1234 = vmatmul.mubr.f32.gmra.mxu0 %v142
    %v1235 = vpop.f32.mrf.mxu0
    %v1236 = vadd.f32 %v1166, %v1235
    %v1237 = vpop.f32.mrf.mxu0
    %1238 = vdwg.mxu0
    %1239 = vmatprep.subr.mxu0 0.0
    %1240 = vmatpush1.msra.mxu0 %v405
    %1241 = vmatprep.subr.mxu0 0.0
    %1242 = vmatpush1.msra.mxu0 %v404
    %1243 = vmatprep.subr.mxu0 0.0
    %1244 = vmatpush1.msra.mxu0 %v403
    %1245 = vmatprep.subr.mxu0 0.0
    %1246 = vmatpush1.msra.mxu0 %v402
    %1247 = vmatprep.subr.mxu0 0.0
    %1248 = vmatpush1.msra.mxu0 %v401
    %1249 = vmatprep.subr.mxu0 0.0
    %1250 = vmatpush1.msra.mxu0 %v400
    %1251 = vmatprep.subr.mxu0 0.0
    %1252 = vmatpush1.msra.mxu0 %v399
    %1253 = vmatprep.subr.mxu0 0.0
    %1254 = vmatpush1.msra.mxu0 %v398
    %1255 = vmatprep.subr.mxu0 0.0
    %1256 = vmatpush1.msra.mxu0 %v397
    %1257 = vmatprep.subr.mxu0 0.0
    %1258 = vmatpush1.msra.mxu0 %v396
    %1259 = vmatprep.subr.mxu0 0.0
    %1260 = vmatpush1.msra.mxu0 %v395
    %1261 = vmatprep.subr.mxu0 0.0
    %1262 = vmatpush1.msra.mxu0 %v394
    %1263 = vmatprep.subr.mxu0 0.0
    %1264 = vmatpush1.msra.mxu0 %v393
    %1265 = vmatprep.subr.mxu0 0.0
    %1266 = vmatpush1.msra.mxu0 %v392
    %1267 = vmatprep.subr.mxu0 0.0
    %1268 = vmatpush1.msra.mxu0 %v391
    %1269 = vmatprep.subr.mxu0 0.0
    %1270 = vmatpush1.msra.mxu0 %v390
    %1271 = vmatprep.subr.mxu0 0.0
    %1272 = vmatpush2.msra.mxu0 %v421
    %1273 = vmatprep.subr.mxu0 0.0
    %1274 = vmatpush2.msra.mxu0 %v420
    %1275 = vmatprep.subr.mxu0 0.0
    %1276 = vmatpush2.msra.mxu0 %v419
    %1277 = vmatprep.subr.mxu0 0.0
    %1278 = vmatpush2.msra.mxu0 %v418
    %1279 = vmatprep.subr.mxu0 0.0
    %1280 = vmatpush2.msra.mxu0 %v417
    %1281 = vmatprep.subr.mxu0 0.0
    %1282 = vmatpush2.msra.mxu0 %v416
    %1283 = vmatprep.subr.mxu0 0.0
    %1284 = vmatpush2.msra.mxu0 %v415
    %1285 = vmatprep.subr.mxu0 0.0
    %1286 = vmatpush2.msra.mxu0 %v414
    %1287 = vmatprep.subr.mxu0 0.0
    %1288 = vmatpush2.msra.mxu0 %v413
    %1289 = vmatprep.subr.mxu0 0.0
    %1290 = vmatpush2.msra.mxu0 %v412
    %1291 = vmatprep.subr.mxu0 0.0
    %1292 = vmatpush2.msra.mxu0 %v411
    %1293 = vmatprep.subr.mxu0 0.0
    %1294 = vmatpush2.msra.mxu0 %v410
    %1295 = vmatprep.subr.mxu0 0.0
    %1296 = vmatpush2.msra.mxu0 %v409
    %1297 = vmatprep.subr.mxu0 0.0
    %1298 = vmatpush2.msra.mxu0 %v408
    %1299 = vmatprep.subr.mxu0 0.0
    %1300 = vmatpush2.msra.mxu0 %v407
    %1301 = vmatprep.subr.mxu0 0.0
    %1302 = vmatpush2.msra.mxu0 %v406
    %1303 = vmatprep.mubr.f32.mxu0 %v145
    %1304 = vmatmul.mubr.f32.gmra.mxu0 %v144
    %v1305 = vpop.f32.mrf.mxu0
    %v1306 = vadd.f32 %v1236, %v1305
    %v1307 = vpop.f32.mrf.mxu0
    %1308 = vdwg.mxu0
    %1309 = vmatprep.subr.mxu0 0.0
    %1310 = vmatpush1.msra.mxu0 %v437
    %1311 = vmatprep.subr.mxu0 0.0
    %1312 = vmatpush1.msra.mxu0 %v436
    %1313 = vmatprep.subr.mxu0 0.0
    %1314 = vmatpush1.msra.mxu0 %v435
    %1315 = vmatprep.subr.mxu0 0.0
    %1316 = vmatpush1.msra.mxu0 %v434
    %1317 = vmatprep.subr.mxu0 0.0
    %1318 = vmatpush1.msra.mxu0 %v433
    %1319 = vmatprep.subr.mxu0 0.0
    %1320 = vmatpush1.msra.mxu0 %v432
    %1321 = vmatprep.subr.mxu0 0.0
    %1322 = vmatpush1.msra.mxu0 %v431
    %1323 = vmatprep.subr.mxu0 0.0
    %1324 = vmatpush1.msra.mxu0 %v430
    %1325 = vmatprep.subr.mxu0 0.0
    %1326 = vmatpush1.msra.mxu0 %v429
    %1327 = vmatprep.subr.mxu0 0.0
    %1328 = vmatpush1.msra.mxu0 %v428
    %1329 = vmatprep.subr.mxu0 0.0
    %1330 = vmatpush1.msra.mxu0 %v427
    %1331 = vmatprep.subr.mxu0 0.0
    %1332 = vmatpush1.msra.mxu0 %v426
    %1333 = vmatprep.subr.mxu0 0.0
    %1334 = vmatpush1.msra.mxu0 %v425
    %1335 = vmatprep.subr.mxu0 0.0
    %1336 = vmatpush1.msra.mxu0 %v424
    %1337 = vmatprep.subr.mxu0 0.0
    %1338 = vmatpush1.msra.mxu0 %v423
    %1339 = vmatprep.subr.mxu0 0.0
    %1340 = vmatpush1.msra.mxu0 %v422
    %1341 = vmatprep.subr.mxu0 0.0
    %1342 = vmatpush2.msra.mxu0 %v453
    %1343 = vmatprep.subr.mxu0 0.0
    %1344 = vmatpush2.msra.mxu0 %v452
    %1345 = vmatprep.subr.mxu0 0.0
    %1346 = vmatpush2.msra.mxu0 %v451
    %1347 = vmatprep.subr.mxu0 0.0
    %1348 = vmatpush2.msra.mxu0 %v450
    %1349 = vmatprep.subr.mxu0 0.0
    %1350 = vmatpush2.msra.mxu0 %v449
    %1351 = vmatprep.subr.mxu0 0.0
    %1352 = vmatpush2.msra.mxu0 %v448
    %1353 = vmatprep.subr.mxu0 0.0
    %1354 = vmatpush2.msra.mxu0 %v447
    %1355 = vmatprep.subr.mxu0 0.0
    %1356 = vmatpush2.msra.mxu0 %v446
    %1357 = vmatprep.subr.mxu0 0.0
    %1358 = vmatpush2.msra.mxu0 %v445
    %1359 = vmatprep.subr.mxu0 0.0
    %1360 = vmatpush2.msra.mxu0 %v444
    %1361 = vmatprep.subr.mxu0 0.0
    %1362 = vmatpush2.msra.mxu0 %v443
    %1363 = vmatprep.subr.mxu0 0.0
    %1364 = vmatpush2.msra.mxu0 %v442
    %1365 = vmatprep.subr.mxu0 0.0
    %1366 = vmatpush2.msra.mxu0 %v441
    %1367 = vmatprep.subr.mxu0 0.0
    %1368 = vmatpush2.msra.mxu0 %v440
    %1369 = vmatprep.subr.mxu0 0.0
    %1370 = vmatpush2.msra.mxu0 %v439
    %1371 = vmatprep.subr.mxu0 0.0
    %1372 = vmatpush2.msra.mxu0 %v438
    %1373 = vmatprep.mubr.f32.mxu0 %v147
    %1374 = vmatmul.mubr.f32.gmra.mxu0 %v146
    %v1375 = vpop.f32.mrf.mxu0
    %v1376 = vadd.f32 %v1306, %v1375
    %v1377 = vpop.f32.mrf.mxu0
    %1378 = vdwg.mxu0
    %1379 = vmatprep.subr.mxu0 0.0
    %1380 = vmatpush1.msra.mxu0 %v469
    %1381 = vmatprep.subr.mxu0 0.0
    %1382 = vmatpush1.msra.mxu0 %v468
    %1383 = vmatprep.subr.mxu0 0.0
    %1384 = vmatpush1.msra.mxu0 %v467
    %1385 = vmatprep.subr.mxu0 0.0
    %1386 = vmatpush1.msra.mxu0 %v466
    %1387 = vmatprep.subr.mxu0 0.0
    %1388 = vmatpush1.msra.mxu0 %v465
    %1389 = vmatprep.subr.mxu0 0.0
    %1390 = vmatpush1.msra.mxu0 %v464
    %1391 = vmatprep.subr.mxu0 0.0
    %1392 = vmatpush1.msra.mxu0 %v463
    %1393 = vmatprep.subr.mxu0 0.0
    %1394 = vmatpush1.msra.mxu0 %v462
    %1395 = vmatprep.subr.mxu0 0.0
    %1396 = vmatpush1.msra.mxu0 %v461
    %1397 = vmatprep.subr.mxu0 0.0
    %1398 = vmatpush1.msra.mxu0 %v460
    %1399 = vmatprep.subr.mxu0 0.0
    %1400 = vmatpush1.msra.mxu0 %v459
    %1401 = vmatprep.subr.mxu0 0.0
    %1402 = vmatpush1.msra.mxu0 %v458
    %1403 = vmatprep.subr.mxu0 0.0
    %1404 = vmatpush1.msra.mxu0 %v457
    %1405 = vmatprep.subr.mxu0 0.0
    %1406 = vmatpush1.msra.mxu0 %v456
    %1407 = vmatprep.subr.mxu0 0.0
    %1408 = vmatpush1.msra.mxu0 %v455
    %1409 = vmatprep.subr.mxu0 0.0
    %1410 = vmatpush1.msra.mxu0 %v454
    %1411 = vmatprep.subr.mxu0 0.0
    %1412 = vmatpush2.msra.mxu0 %v485
    %1413 = vmatprep.subr.mxu0 0.0
    %1414 = vmatpush2.msra.mxu0 %v484
    %1415 = vmatprep.subr.mxu0 0.0
    %1416 = vmatpush2.msra.mxu0 %v483
    %1417 = vmatprep.subr.mxu0 0.0
    %1418 = vmatpush2.msra.mxu0 %v482
    %1419 = vmatprep.subr.mxu0 0.0
    %1420 = vmatpush2.msra.mxu0 %v481
    %1421 = vmatprep.subr.mxu0 0.0
    %1422 = vmatpush2.msra.mxu0 %v480
    %1423 = vmatprep.subr.mxu0 0.0
    %1424 = vmatpush2.msra.mxu0 %v479
    %1425 = vmatprep.subr.mxu0 0.0
    %1426 = vmatpush2.msra.mxu0 %v478
    %1427 = vmatprep.subr.mxu0 0.0
    %1428 = vmatpush2.msra.mxu0 %v477
    %1429 = vmatprep.subr.mxu0 0.0
    %1430 = vmatpush2.msra.mxu0 %v476
    %1431 = vmatprep.subr.mxu0 0.0
    %1432 = vmatpush2.msra.mxu0 %v475
    %1433 = vmatprep.subr.mxu0 0.0
    %1434 = vmatpush2.msra.mxu0 %v474
    %1435 = vmatprep.subr.mxu0 0.0
    %1436 = vmatpush2.msra.mxu0 %v473
    %1437 = vmatprep.subr.mxu0 0.0
    %1438 = vmatpush2.msra.mxu0 %v472
    %1439 = vmatprep.subr.mxu0 0.0
    %1440 = vmatpush2.msra.mxu0 %v471
    %1441 = vmatprep.subr.mxu0 0.0
    %1442 = vmatpush2.msra.mxu0 %v470
    %1443 = vmatprep.mubr.f32.mxu0 %v149
    %1444 = vmatmul.mubr.f32.gmra.mxu0 %v148
    %v1445 = vpop.f32.mrf.mxu0
    %v1446 = vadd.f32 %v1376, %v1445
    %v1447 = vpop.f32.mrf.mxu0
    %1448 = vdwg.mxu0
    %1449 = vmatprep.subr.mxu0 0.0
    %1450 = vmatpush1.msra.mxu0 %v501
    %1451 = vmatprep.subr.mxu0 0.0
    %1452 = vmatpush1.msra.mxu0 %v500
    %1453 = vmatprep.subr.mxu0 0.0
    %1454 = vmatpush1.msra.mxu0 %v499
    %1455 = vmatprep.subr.mxu0 0.0
    %1456 = vmatpush1.msra.mxu0 %v498
    %1457 = vmatprep.subr.mxu0 0.0
    %1458 = vmatpush1.msra.mxu0 %v497
    %1459 = vmatprep.subr.mxu0 0.0
    %1460 = vmatpush1.msra.mxu0 %v496
    %1461 = vmatprep.subr.mxu0 0.0
    %1462 = vmatpush1.msra.mxu0 %v495
    %1463 = vmatprep.subr.mxu0 0.0
    %1464 = vmatpush1.msra.mxu0 %v494
    %1465 = vmatprep.subr.mxu0 0.0
    %1466 = vmatpush1.msra.mxu0 %v493
    %1467 = vmatprep.subr.mxu0 0.0
    %1468 = vmatpush1.msra.mxu0 %v492
    %1469 = vmatprep.subr.mxu0 0.0
    %1470 = vmatpush1.msra.mxu0 %v491
    %1471 = vmatprep.subr.mxu0 0.0
    %1472 = vmatpush1.msra.mxu0 %v490
    %1473 = vmatprep.subr.mxu0 0.0
    %1474 = vmatpush1.msra.mxu0 %v489
    %1475 = vmatprep.subr.mxu0 0.0
    %1476 = vmatpush1.msra.mxu0 %v488
    %1477 = vmatprep.subr.mxu0 0.0
    %1478 = vmatpush1.msra.mxu0 %v487
    %1479 = vmatprep.subr.mxu0 0.0
    %1480 = vmatpush1.msra.mxu0 %v486
    %1481 = vmatprep.subr.mxu0 0.0
    %1482 = vmatpush2.msra.mxu0 %v517
    %1483 = vmatprep.subr.mxu0 0.0
    %1484 = vmatpush2.msra.mxu0 %v516
    %1485 = vmatprep.subr.mxu0 0.0
    %1486 = vmatpush2.msra.mxu0 %v515
    %1487 = vmatprep.subr.mxu0 0.0
    %1488 = vmatpush2.msra.mxu0 %v514
    %1489 = vmatprep.subr.mxu0 0.0
    %1490 = vmatpush2.msra.mxu0 %v513
    %1491 = vmatprep.subr.mxu0 0.0
    %1492 = vmatpush2.msra.mxu0 %v512
    %1493 = vmatprep.subr.mxu0 0.0
    %1494 = vmatpush2.msra.mxu0 %v511
    %1495 = vmatprep.subr.mxu0 0.0
    %1496 = vmatpush2.msra.mxu0 %v510
    %1497 = vmatprep.subr.mxu0 0.0
    %1498 = vmatpush2.msra.mxu0 %v509
    %1499 = vmatprep.subr.mxu0 0.0
    %1500 = vmatpush2.msra.mxu0 %v508
    %1501 = vmatprep.subr.mxu0 0.0
    %1502 = vmatpush2.msra.mxu0 %v507
    %1503 = vmatprep.subr.mxu0 0.0
    %1504 = vmatpush2.msra.mxu0 %v506
    %1505 = vmatprep.subr.mxu0 0.0
    %1506 = vmatpush2.msra.mxu0 %v505
    %1507 = vmatprep.subr.mxu0 0.0
    %1508 = vmatpush2.msra.mxu0 %v504
    %1509 = vmatprep.subr.mxu0 0.0
    %1510 = vmatpush2.msra.mxu0 %v503
    %1511 = vmatprep.subr.mxu0 0.0
    %1512 = vmatpush2.msra.mxu0 %v502
    %1513 = vmatprep.mubr.f32.mxu0 %v151
    %1514 = vmatmul.mubr.f32.gmra.mxu0 %v150
    %v1515 = vpop.f32.mrf.mxu0
    %v1516 = vadd.f32 %v1446, %v1515
    %v1517 = vpop.f32.mrf.mxu0
    %1518 = vdwg.mxu0
    %1519 = vmatprep.subr.mxu0 0.0
    %1520 = vmatpush1.msra.mxu0 %v533
    %1521 = vmatprep.subr.mxu0 0.0
    %1522 = vmatpush1.msra.mxu0 %v532
    %1523 = vmatprep.subr.mxu0 0.0
    %1524 = vmatpush1.msra.mxu0 %v531
    %1525 = vmatprep.subr.mxu0 0.0
    %1526 = vmatpush1.msra.mxu0 %v530
    %1527 = vmatprep.subr.mxu0 0.0
    %1528 = vmatpush1.msra.mxu0 %v529
    %1529 = vmatprep.subr.mxu0 0.0
    %1530 = vmatpush1.msra.mxu0 %v528
    %1531 = vmatprep.subr.mxu0 0.0
    %1532 = vmatpush1.msra.mxu0 %v527
    %1533 = vmatprep.subr.mxu0 0.0
    %1534 = vmatpush1.msra.mxu0 %v526
    %1535 = vmatprep.subr.mxu0 0.0
    %1536 = vmatpush1.msra.mxu0 %v525
    %1537 = vmatprep.subr.mxu0 0.0
    %1538 = vmatpush1.msra.mxu0 %v524
    %1539 = vmatprep.subr.mxu0 0.0
    %1540 = vmatpush1.msra.mxu0 %v523
    %1541 = vmatprep.subr.mxu0 0.0
    %1542 = vmatpush1.msra.mxu0 %v522
    %1543 = vmatprep.subr.mxu0 0.0
    %1544 = vmatpush1.msra.mxu0 %v521
    %1545 = vmatprep.subr.mxu0 0.0
    %1546 = vmatpush1.msra.mxu0 %v520
    %1547 = vmatprep.subr.mxu0 0.0
    %1548 = vmatpush1.msra.mxu0 %v519
    %1549 = vmatprep.subr.mxu0 0.0
    %1550 = vmatpush1.msra.mxu0 %v518
    %1551 = vmatprep.subr.mxu0 0.0
    %1552 = vmatpush2.msra.mxu0 %v549
    %1553 = vmatprep.subr.mxu0 0.0
    %1554 = vmatpush2.msra.mxu0 %v548
    %1555 = vmatprep.subr.mxu0 0.0
    %1556 = vmatpush2.msra.mxu0 %v547
    %1557 = vmatprep.subr.mxu0 0.0
    %1558 = vmatpush2.msra.mxu0 %v546
    %1559 = vmatprep.subr.mxu0 0.0
    %1560 = vmatpush2.msra.mxu0 %v545
    %1561 = vmatprep.subr.mxu0 0.0
    %1562 = vmatpush2.msra.mxu0 %v544
    %1563 = vmatprep.subr.mxu0 0.0
    %1564 = vmatpush2.msra.mxu0 %v543
    %1565 = vmatprep.subr.mxu0 0.0
    %1566 = vmatpush2.msra.mxu0 %v542
    %1567 = vmatprep.subr.mxu0 0.0
    %1568 = vmatpush2.msra.mxu0 %v541
    %1569 = vmatprep.subr.mxu0 0.0
    %1570 = vmatpush2.msra.mxu0 %v540
    %1571 = vmatprep.subr.mxu0 0.0
    %1572 = vmatpush2.msra.mxu0 %v539
    %1573 = vmatprep.subr.mxu0 0.0
    %1574 = vmatpush2.msra.mxu0 %v538
    %1575 = vmatprep.subr.mxu0 0.0
    %1576 = vmatpush2.msra.mxu0 %v537
    %1577 = vmatprep.subr.mxu0 0.0
    %1578 = vmatpush2.msra.mxu0 %v536
    %1579 = vmatprep.subr.mxu0 0.0
    %1580 = vmatpush2.msra.mxu0 %v535
    %1581 = vmatprep.subr.mxu0 0.0
    %1582 = vmatpush2.msra.mxu0 %v534
    %1583 = vmatprep.mubr.f32.mxu0 %v153
    %1584 = vmatmul.mubr.f32.gmra.mxu0 %v152
    %v1585 = vpop.f32.mrf.mxu0
    %v1586 = vadd.f32 %v1516, %v1585
    %v1587 = vpop.f32.mrf.mxu0
    %1588 = vdwg.mxu0
    %1589 = vmatprep.subr.mxu0 0.0
    %1590 = vmatpush1.msra.mxu0 %v565
    %1591 = vmatprep.subr.mxu0 0.0
    %1592 = vmatpush1.msra.mxu0 %v564
    %1593 = vmatprep.subr.mxu0 0.0
    %1594 = vmatpush1.msra.mxu0 %v563
    %1595 = vmatprep.subr.mxu0 0.0
    %1596 = vmatpush1.msra.mxu0 %v562
    %1597 = vmatprep.subr.mxu0 0.0
    %1598 = vmatpush1.msra.mxu0 %v561
    %1599 = vmatprep.subr.mxu0 0.0
    %1600 = vmatpush1.msra.mxu0 %v560
    %1601 = vmatprep.subr.mxu0 0.0
    %1602 = vmatpush1.msra.mxu0 %v559
    %1603 = vmatprep.subr.mxu0 0.0
    %1604 = vmatpush1.msra.mxu0 %v558
    %1605 = vmatprep.subr.mxu0 0.0
    %1606 = vmatpush1.msra.mxu0 %v557
    %1607 = vmatprep.subr.mxu0 0.0
    %1608 = vmatpush1.msra.mxu0 %v556
    %1609 = vmatprep.subr.mxu0 0.0
    %1610 = vmatpush1.msra.mxu0 %v555
    %1611 = vmatprep.subr.mxu0 0.0
    %1612 = vmatpush1.msra.mxu0 %v554
    %1613 = vmatprep.subr.mxu0 0.0
    %1614 = vmatpush1.msra.mxu0 %v553
    %1615 = vmatprep.subr.mxu0 0.0
    %1616 = vmatpush1.msra.mxu0 %v552
    %1617 = vmatprep.subr.mxu0 0.0
    %1618 = vmatpush1.msra.mxu0 %v551
    %1619 = vmatprep.subr.mxu0 0.0
    %1620 = vmatpush1.msra.mxu0 %v550
    %1621 = vmatprep.subr.mxu0 0.0
    %1622 = vmatpush2.msra.mxu0 %v581
    %1623 = vmatprep.subr.mxu0 0.0
    %1624 = vmatpush2.msra.mxu0 %v580
    %1625 = vmatprep.subr.mxu0 0.0
    %1626 = vmatpush2.msra.mxu0 %v579
    %1627 = vmatprep.subr.mxu0 0.0
    %1628 = vmatpush2.msra.mxu0 %v578
    %1629 = vmatprep.subr.mxu0 0.0
    %1630 = vmatpush2.msra.mxu0 %v577
    %1631 = vmatprep.subr.mxu0 0.0
    %1632 = vmatpush2.msra.mxu0 %v576
    %1633 = vmatprep.subr.mxu0 0.0
    %1634 = vmatpush2.msra.mxu0 %v575
    %1635 = vmatprep.subr.mxu0 0.0
    %1636 = vmatpush2.msra.mxu0 %v574
    %1637 = vmatprep.subr.mxu0 0.0
    %1638 = vmatpush2.msra.mxu0 %v573
    %1639 = vmatprep.subr.mxu0 0.0
    %1640 = vmatpush2.msra.mxu0 %v572
    %1641 = vmatprep.subr.mxu0 0.0
    %1642 = vmatpush2.msra.mxu0 %v571
    %1643 = vmatprep.subr.mxu0 0.0
    %1644 = vmatpush2.msra.mxu0 %v570
    %1645 = vmatprep.subr.mxu0 0.0
    %1646 = vmatpush2.msra.mxu0 %v569
    %1647 = vmatprep.subr.mxu0 0.0
    %1648 = vmatpush2.msra.mxu0 %v568
    %1649 = vmatprep.subr.mxu0 0.0
    %1650 = vmatpush2.msra.mxu0 %v567
    %1651 = vmatprep.subr.mxu0 0.0
    %1652 = vmatpush2.msra.mxu0 %v566
    %1653 = vmatprep.mubr.f32.mxu0 %v155
    %1654 = vmatmul.mubr.f32.gmra.mxu0 %v154
    %v1655 = vpop.f32.mrf.mxu0
    %v1656 = vadd.f32 %v1586, %v1655
    %v1657 = vpop.f32.mrf.mxu0
    %1658 = vdwg.mxu0
    %1659 = vmatprep.subr.mxu0 0.0
    %1660 = vmatpush1.msra.mxu0 %v597
    %1661 = vmatprep.subr.mxu0 0.0
    %1662 = vmatpush1.msra.mxu0 %v596
    %1663 = vmatprep.subr.mxu0 0.0
    %1664 = vmatpush1.msra.mxu0 %v595
    %1665 = vmatprep.subr.mxu0 0.0
    %1666 = vmatpush1.msra.mxu0 %v594
    %1667 = vmatprep.subr.mxu0 0.0
    %1668 = vmatpush1.msra.mxu0 %v593
    %1669 = vmatprep.subr.mxu0 0.0
    %1670 = vmatpush1.msra.mxu0 %v592
    %1671 = vmatprep.subr.mxu0 0.0
    %1672 = vmatpush1.msra.mxu0 %v591
    %1673 = vmatprep.subr.mxu0 0.0
    %1674 = vmatpush1.msra.mxu0 %v590
    %1675 = vmatprep.subr.mxu0 0.0
    %1676 = vmatpush1.msra.mxu0 %v589
    %1677 = vmatprep.subr.mxu0 0.0
    %1678 = vmatpush1.msra.mxu0 %v588
    %1679 = vmatprep.subr.mxu0 0.0
    %1680 = vmatpush1.msra.mxu0 %v587
    %1681 = vmatprep.subr.mxu0 0.0
    %1682 = vmatpush1.msra.mxu0 %v586
    %1683 = vmatprep.subr.mxu0 0.0
    %1684 = vmatpush1.msra.mxu0 %v585
    %1685 = vmatprep.subr.mxu0 0.0
    %1686 = vmatpush1.msra.mxu0 %v584
    %1687 = vmatprep.subr.mxu0 0.0
    %1688 = vmatpush1.msra.mxu0 %v583
    %1689 = vmatprep.subr.mxu0 0.0
    %1690 = vmatpush1.msra.mxu0 %v582
    %1691 = vmatprep.subr.mxu0 0.0
    %1692 = vmatpush2.msra.mxu0 %v613
    %1693 = vmatprep.subr.mxu0 0.0
    %1694 = vmatpush2.msra.mxu0 %v612
    %1695 = vmatprep.subr.mxu0 0.0
    %1696 = vmatpush2.msra.mxu0 %v611
    %1697 = vmatprep.subr.mxu0 0.0
    %1698 = vmatpush2.msra.mxu0 %v610
    %1699 = vmatprep.subr.mxu0 0.0
    %1700 = vmatpush2.msra.mxu0 %v609
    %1701 = vmatprep.subr.mxu0 0.0
    %1702 = vmatpush2.msra.mxu0 %v608
    %1703 = vmatprep.subr.mxu0 0.0
    %1704 = vmatpush2.msra.mxu0 %v607
    %1705 = vmatprep.subr.mxu0 0.0
    %1706 = vmatpush2.msra.mxu0 %v606
    %1707 = vmatprep.subr.mxu0 0.0
    %1708 = vmatpush2.msra.mxu0 %v605
    %1709 = vmatprep.subr.mxu0 0.0
    %1710 = vmatpush2.msra.mxu0 %v604
    %1711 = vmatprep.subr.mxu0 0.0
    %1712 = vmatpush2.msra.mxu0 %v603
    %1713 = vmatprep.subr.mxu0 0.0
    %1714 = vmatpush2.msra.mxu0 %v602
    %1715 = vmatprep.subr.mxu0 0.0
    %1716 = vmatpush2.msra.mxu0 %v601
    %1717 = vmatprep.subr.mxu0 0.0
    %1718 = vmatpush2.msra.mxu0 %v600
    %1719 = vmatprep.subr.mxu0 0.0
    %1720 = vmatpush2.msra.mxu0 %v599
    %1721 = vmatprep.subr.mxu0 0.0
    %1722 = vmatpush2.msra.mxu0 %v598
    %1723 = vmatprep.mubr.f32.mxu0 %v157
    %1724 = vmatmul.mubr.f32.gmra.mxu0 %v156
    %v1725 = vpop.f32.mrf.mxu0
    %v1726 = vadd.f32 %v1656, %v1725
    %v1727 = vpop.f32.mrf.mxu0
    %1728 = vdwg.mxu0
    %1729 = vmatprep.subr.mxu0 0.0
    %1730 = vmatpush1.msra.mxu0 %v629
    %1731 = vmatprep.subr.mxu0 0.0
    %1732 = vmatpush1.msra.mxu0 %v628
    %1733 = vmatprep.subr.mxu0 0.0
    %1734 = vmatpush1.msra.mxu0 %v627
    %1735 = vmatprep.subr.mxu0 0.0
    %1736 = vmatpush1.msra.mxu0 %v626
    %1737 = vmatprep.subr.mxu0 0.0
    %1738 = vmatpush1.msra.mxu0 %v625
    %1739 = vmatprep.subr.mxu0 0.0
    %1740 = vmatpush1.msra.mxu0 %v624
    %1741 = vmatprep.subr.mxu0 0.0
    %1742 = vmatpush1.msra.mxu0 %v623
    %1743 = vmatprep.subr.mxu0 0.0
    %1744 = vmatpush1.msra.mxu0 %v622
    %1745 = vmatprep.subr.mxu0 0.0
    %1746 = vmatpush1.msra.mxu0 %v621
    %1747 = vmatprep.subr.mxu0 0.0
    %1748 = vmatpush1.msra.mxu0 %v620
    %1749 = vmatprep.subr.mxu0 0.0
    %1750 = vmatpush1.msra.mxu0 %v619
    %1751 = vmatprep.subr.mxu0 0.0
    %1752 = vmatpush1.msra.mxu0 %v618
    %1753 = vmatprep.subr.mxu0 0.0
    %1754 = vmatpush1.msra.mxu0 %v617
    %1755 = vmatprep.subr.mxu0 0.0
    %1756 = vmatpush1.msra.mxu0 %v616
    %1757 = vmatprep.subr.mxu0 0.0
    %1758 = vmatpush1.msra.mxu0 %v615
    %1759 = vmatprep.subr.mxu0 0.0
    %1760 = vmatpush1.msra.mxu0 %v614
    %1761 = vmatprep.subr.mxu0 0.0
    %1762 = vmatpush2.msra.mxu0 %v645
    %1763 = vmatprep.subr.mxu0 0.0
    %1764 = vmatpush2.msra.mxu0 %v644
    %1765 = vmatprep.subr.mxu0 0.0
    %1766 = vmatpush2.msra.mxu0 %v643
    %1767 = vmatprep.subr.mxu0 0.0
    %1768 = vmatpush2.msra.mxu0 %v642
    %1769 = vmatprep.subr.mxu0 0.0
    %1770 = vmatpush2.msra.mxu0 %v641
    %1771 = vmatprep.subr.mxu0 0.0
    %1772 = vmatpush2.msra.mxu0 %v640
    %1773 = vmatprep.subr.mxu0 0.0
    %1774 = vmatpush2.msra.mxu0 %v639
    %1775 = vmatprep.subr.mxu0 0.0
    %1776 = vmatpush2.msra.mxu0 %v638
    %1777 = vmatprep.subr.mxu0 0.0
    %1778 = vmatpush2.msra.mxu0 %v637
    %1779 = vmatprep.subr.mxu0 0.0
    %1780 = vmatpush2.msra.mxu0 %v636
    %1781 = vmatprep.subr.mxu0 0.0
    %1782 = vmatpush2.msra.mxu0 %v635
    %1783 = vmatprep.subr.mxu0 0.0
    %1784 = vmatpush2.msra.mxu0 %v634
    %1785 = vmatprep.subr.mxu0 0.0
    %1786 = vmatpush2.msra.mxu0 %v633
    %1787 = vmatprep.subr.mxu0 0.0
    %1788 = vmatpush2.msra.mxu0 %v632
    %1789 = vmatprep.subr.mxu0 0.0
    %1790 = vmatpush2.msra.mxu0 %v631
    %1791 = vmatprep.subr.mxu0 0.0
    %1792 = vmatpush2.msra.mxu0 %v630
    %1793 = vmatprep.mubr.f32.mxu0 %v159
    %1794 = vmatmul.mubr.f32.gmra.mxu0 %v158
    %v1795 = vpop.f32.mrf.mxu0
    %v1796 = vadd.f32 %v1726, %v1795
    %v1797 = vpop.f32.mrf.mxu0
    %1798 = vdwg.mxu0
    %1799 = vmatprep.subr.mxu0 0.0
    %1800 = vmatpush1.msra.mxu0 %v661
    %1801 = vmatprep.subr.mxu0 0.0
    %1802 = vmatpush1.msra.mxu0 %v660
    %1803 = vmatprep.subr.mxu0 0.0
    %1804 = vmatpush1.msra.mxu0 %v659
    %1805 = vmatprep.subr.mxu0 0.0
    %1806 = vmatpush1.msra.mxu0 %v658
    %1807 = vmatprep.subr.mxu0 0.0
    %1808 = vmatpush1.msra.mxu0 %v657
    %1809 = vmatprep.subr.mxu0 0.0
    %1810 = vmatpush1.msra.mxu0 %v656
    %1811 = vmatprep.subr.mxu0 0.0
    %1812 = vmatpush1.msra.mxu0 %v655
    %1813 = vmatprep.subr.mxu0 0.0
    %1814 = vmatpush1.msra.mxu0 %v654
    %1815 = vmatprep.subr.mxu0 0.0
    %1816 = vmatpush1.msra.mxu0 %v653
    %1817 = vmatprep.subr.mxu0 0.0
    %1818 = vmatpush1.msra.mxu0 %v652
    %1819 = vmatprep.subr.mxu0 0.0
    %1820 = vmatpush1.msra.mxu0 %v651
    %1821 = vmatprep.subr.mxu0 0.0
    %1822 = vmatpush1.msra.mxu0 %v650
    %1823 = vmatprep.subr.mxu0 0.0
    %1824 = vmatpush1.msra.mxu0 %v649
    %1825 = vmatprep.subr.mxu0 0.0
    %1826 = vmatpush1.msra.mxu0 %v648
    %1827 = vmatprep.subr.mxu0 0.0
    %1828 = vmatpush1.msra.mxu0 %v647
    %1829 = vmatprep.subr.mxu0 0.0
    %1830 = vmatpush1.msra.mxu0 %v646
    %1831 = vmatprep.subr.mxu0 0.0
    %1832 = vmatpush2.msra.mxu0 %v677
    %1833 = vmatprep.subr.mxu0 0.0
    %1834 = vmatpush2.msra.mxu0 %v676
    %1835 = vmatprep.subr.mxu0 0.0
    %1836 = vmatpush2.msra.mxu0 %v675
    %1837 = vmatprep.subr.mxu0 0.0
    %1838 = vmatpush2.msra.mxu0 %v674
    %1839 = vmatprep.subr.mxu0 0.0
    %1840 = vmatpush2.msra.mxu0 %v673
    %1841 = vmatprep.subr.mxu0 0.0
    %1842 = vmatpush2.msra.mxu0 %v672
    %1843 = vmatprep.subr.mxu0 0.0
    %1844 = vmatpush2.msra.mxu0 %v671
    %1845 = vmatprep.subr.mxu0 0.0
    %1846 = vmatpush2.msra.mxu0 %v670
    %1847 = vmatprep.subr.mxu0 0.0
    %1848 = vmatpush2.msra.mxu0 %v669
    %1849 = vmatprep.subr.mxu0 0.0
    %1850 = vmatpush2.msra.mxu0 %v668
    %1851 = vmatprep.subr.mxu0 0.0
    %1852 = vmatpush2.msra.mxu0 %v667
    %1853 = vmatprep.subr.mxu0 0.0
    %1854 = vmatpush2.msra.mxu0 %v666
    %1855 = vmatprep.subr.mxu0 0.0
    %1856 = vmatpush2.msra.mxu0 %v665
    %1857 = vmatprep.subr.mxu0 0.0
    %1858 = vmatpush2.msra.mxu0 %v664
    %1859 = vmatprep.subr.mxu0 0.0
    %1860 = vmatpush2.msra.mxu0 %v663
    %1861 = vmatprep.subr.mxu0 0.0
    %1862 = vmatpush2.msra.mxu0 %v662
    %1863 = vmatprep.mubr.f32.mxu0 %v161
    %1864 = vmatmul.mubr.f32.gmra.mxu0 %v160
    %v1865 = vpop.f32.mrf.mxu0
    %v1866 = vadd.f32 %v1796, %v1865
    %v1867 = vpop.f32.mrf.mxu0
    %1868 = vdwg.mxu0
    %1869 = vmatprep.subr.mxu0 0.0
    %1870 = vmatpush1.msra.mxu0 %v693
    %1871 = vmatprep.subr.mxu0 0.0
    %1872 = vmatpush1.msra.mxu0 %v692
    %1873 = vmatprep.subr.mxu0 0.0
    %1874 = vmatpush1.msra.mxu0 %v691
    %1875 = vmatprep.subr.mxu0 0.0
    %1876 = vmatpush1.msra.mxu0 %v690
    %1877 = vmatprep.subr.mxu0 0.0
    %1878 = vmatpush1.msra.mxu0 %v689
    %1879 = vmatprep.subr.mxu0 0.0
    %1880 = vmatpush1.msra.mxu0 %v688
    %1881 = vmatprep.subr.mxu0 0.0
    %1882 = vmatpush1.msra.mxu0 %v687
    %1883 = vmatprep.subr.mxu0 0.0
    %1884 = vmatpush1.msra.mxu0 %v686
    %1885 = vmatprep.subr.mxu0 0.0
    %1886 = vmatpush1.msra.mxu0 %v685
    %1887 = vmatprep.subr.mxu0 0.0
    %1888 = vmatpush1.msra.mxu0 %v684
    %1889 = vmatprep.subr.mxu0 0.0
    %1890 = vmatpush1.msra.mxu0 %v683
    %1891 = vmatprep.subr.mxu0 0.0
    %1892 = vmatpush1.msra.mxu0 %v682
    %1893 = vmatprep.subr.mxu0 0.0
    %1894 = vmatpush1.msra.mxu0 %v681
    %1895 = vmatprep.subr.mxu0 0.0
    %1896 = vmatpush1.msra.mxu0 %v680
    %1897 = vmatprep.subr.mxu0 0.0
    %1898 = vmatpush1.msra.mxu0 %v679
    %1899 = vmatprep.subr.mxu0 0.0
    %1900 = vmatpush1.msra.mxu0 %v678
    %1901 = vmatprep.subr.mxu0 0.0
    %1902 = vmatpush2.msra.mxu0 %v709
    %1903 = vmatprep.subr.mxu0 0.0
    %1904 = vmatpush2.msra.mxu0 %v708
    %1905 = vmatprep.subr.mxu0 0.0
    %1906 = vmatpush2.msra.mxu0 %v707
    %1907 = vmatprep.subr.mxu0 0.0
    %1908 = vmatpush2.msra.mxu0 %v706
    %1909 = vmatprep.subr.mxu0 0.0
    %1910 = vmatpush2.msra.mxu0 %v705
    %1911 = vmatprep.subr.mxu0 0.0
    %1912 = vmatpush2.msra.mxu0 %v704
    %1913 = vmatprep.subr.mxu0 0.0
    %1914 = vmatpush2.msra.mxu0 %v703
    %1915 = vmatprep.subr.mxu0 0.0
    %1916 = vmatpush2.msra.mxu0 %v702
    %1917 = vmatprep.subr.mxu0 0.0
    %1918 = vmatpush2.msra.mxu0 %v701
    %1919 = vmatprep.subr.mxu0 0.0
    %1920 = vmatpush2.msra.mxu0 %v700
    %1921 = vmatprep.subr.mxu0 0.0
    %1922 = vmatpush2.msra.mxu0 %v699
    %1923 = vmatprep.subr.mxu0 0.0
    %1924 = vmatpush2.msra.mxu0 %v698
    %1925 = vmatprep.subr.mxu0 0.0
    %1926 = vmatpush2.msra.mxu0 %v697
    %1927 = vmatprep.subr.mxu0 0.0
    %1928 = vmatpush2.msra.mxu0 %v696
    %1929 = vmatprep.subr.mxu0 0.0
    %1930 = vmatpush2.msra.mxu0 %v695
    %1931 = vmatprep.subr.mxu0 0.0
    %1932 = vmatpush2.msra.mxu0 %v694
    %1933 = vmatprep.mubr.f32.mxu0 %v163
    %1934 = vmatmul.mubr.f32.gmra.mxu0 %v162
    %v1935 = vpop.f32.mrf.mxu0
    %v1936 = vadd.f32 %v1866, %v1935
    %v1937 = vpop.f32.mrf.mxu0
    %1938 = vdwg.mxu0
    %1939 = vmatprep.subr.mxu0 0.0
    %1940 = vmatpush1.msra.mxu0 %v725
    %1941 = vmatprep.subr.mxu0 0.0
    %1942 = vmatpush1.msra.mxu0 %v724
    %1943 = vmatprep.subr.mxu0 0.0
    %1944 = vmatpush1.msra.mxu0 %v723
    %1945 = vmatprep.subr.mxu0 0.0
    %1946 = vmatpush1.msra.mxu0 %v722
    %1947 = vmatprep.subr.mxu0 0.0
    %1948 = vmatpush1.msra.mxu0 %v721
    %1949 = vmatprep.subr.mxu0 0.0
    %1950 = vmatpush1.msra.mxu0 %v720
    %1951 = vmatprep.subr.mxu0 0.0
    %1952 = vmatpush1.msra.mxu0 %v719
    %1953 = vmatprep.subr.mxu0 0.0
    %1954 = vmatpush1.msra.mxu0 %v718
    %1955 = vmatprep.subr.mxu0 0.0
    %1956 = vmatpush1.msra.mxu0 %v717
    %1957 = vmatprep.subr.mxu0 0.0
    %1958 = vmatpush1.msra.mxu0 %v716
    %1959 = vmatprep.subr.mxu0 0.0
    %1960 = vmatpush1.msra.mxu0 %v715
    %1961 = vmatprep.subr.mxu0 0.0
    %1962 = vmatpush1.msra.mxu0 %v714
    %1963 = vmatprep.subr.mxu0 0.0
    %1964 = vmatpush1.msra.mxu0 %v713
    %1965 = vmatprep.subr.mxu0 0.0
    %1966 = vmatpush1.msra.mxu0 %v712
    %1967 = vmatprep.subr.mxu0 0.0
    %1968 = vmatpush1.msra.mxu0 %v711
    %1969 = vmatprep.subr.mxu0 0.0
    %1970 = vmatpush1.msra.mxu0 %v710
    %1971 = vmatprep.subr.mxu0 0.0
    %1972 = vmatpush2.msra.mxu0 %v741
    %1973 = vmatprep.subr.mxu0 0.0
    %1974 = vmatpush2.msra.mxu0 %v740
    %1975 = vmatprep.subr.mxu0 0.0
    %1976 = vmatpush2.msra.mxu0 %v739
    %1977 = vmatprep.subr.mxu0 0.0
    %1978 = vmatpush2.msra.mxu0 %v738
    %1979 = vmatprep.subr.mxu0 0.0
    %1980 = vmatpush2.msra.mxu0 %v737
    %1981 = vmatprep.subr.mxu0 0.0
    %1982 = vmatpush2.msra.mxu0 %v736
    %1983 = vmatprep.subr.mxu0 0.0
    %1984 = vmatpush2.msra.mxu0 %v735
    %1985 = vmatprep.subr.mxu0 0.0
    %1986 = vmatpush2.msra.mxu0 %v734
    %1987 = vmatprep.subr.mxu0 0.0
    %1988 = vmatpush2.msra.mxu0 %v733
    %1989 = vmatprep.subr.mxu0 0.0
    %1990 = vmatpush2.msra.mxu0 %v732
    %1991 = vmatprep.subr.mxu0 0.0
    %1992 = vmatpush2.msra.mxu0 %v731
    %1993 = vmatprep.subr.mxu0 0.0
    %1994 = vmatpush2.msra.mxu0 %v730
    %1995 = vmatprep.subr.mxu0 0.0
    %1996 = vmatpush2.msra.mxu0 %v729
    %1997 = vmatprep.subr.mxu0 0.0
    %1998 = vmatpush2.msra.mxu0 %v728
    %1999 = vmatprep.subr.mxu0 0.0
    %2000 = vmatpush2.msra.mxu0 %v727
    %2001 = vmatprep.subr.mxu0 0.0
    %2002 = vmatpush2.msra.mxu0 %v726
    %2003 = vmatprep.mubr.f32.mxu0 %v165
    %2004 = vmatmul.mubr.f32.gmra.mxu0 %v164
    %v2005 = vpop.f32.mrf.mxu0
    %v2006 = vadd.f32 %v1936, %v2005
    %v2007 = vpop.f32.mrf.mxu0
    %2008 = vdwg.mxu0
    %v2009 = vmax.f32 %v2006, 0.0
    %v2010 = vrot.slane %v2009, 4
    %v2011 = vadd.f32 %v2009, %v2010
    %v2012 = vrot.slane %v2011, 2
    %v2013 = vadd.f32 %v2011, %v2012
    %v2014 = vrot.slane %v2013, 1
    %v2015 = vadd.f32 %v2013, %v2014
    %v2016 = vrcp.pop 8.0
    %v2017 = vmul.f32 %v2015, %v2016
    %v2018 = vmul.f32 %v2009, %v2009
    %v2019 = vrot.slane %v2018, 4
    %v2020 = vadd.f32 %v2018, %v2019
    %v2021 = vrot.slane %v2020, 2
    %v2022 = vadd.f32 %v2020, %v2021
    %v2023 = vrot.slane %v2022, 1
    %v2024 = vadd.f32 %v2022, %v2023
    %v2025 = vmul.f32 %v2024, %v2016
    %v2026 = vmul.f32 %v2017, %v2017
    %v2027 = vsub.f32 %v2025, %v2026
    %v2028 = vld [vmem:[#allocation7] sm:$0x1]
    %v2029 = vadd.f32 %v2027, 1e-05
    %v2030 = vrsqrt.pop %v2029
    %v2031 = vmul.f32 %v2028, %v2030
    %v2032 = vld [vmem:[#allocation8] sm:$0x1]
    %v2033 = vmul.f32 %v2017, %v2031
    %v2034 = vsub.f32 %v2032, %v2033
    %v2036 = vlaneseq
    %v2037 = vshrl.u32 %v2036, 7
    %v2038 = vsub.s32 0, %v2037
    %v2039 = vrot.slane %v2031, %v2038
    %v2041 = vmul.f32 %v2009, %v2039
    %v2043 = vlaneseq
    %v2044 = vshrl.u32 %v2043, 7
    %v2045 = vsub.s32 0, %v2044
    %v2046 = vrot.slane %v2034, %v2045
    %v2048 = vadd.f32 %v2041, %v2046
    %v2049 = vld [vmem:[#allocation10] sm:$0xff]
    %v2050 = vld [vmem:[#allocation10 + $0x8] sm:$0xff]
    %v2051 = vld [vmem:[#allocation10 + $0x10] sm:$0xff]
    %v2052 = vld [vmem:[#allocation10 + $0x18] sm:$0xff]
    %v2053 = vld [vmem:[#allocation10 + $0x20] sm:$0xff]
    %v2054 = vld [vmem:[#allocation10 + $0x28] sm:$0xff]
    %v2055 = vld [vmem:[#allocation10 + $0x30] sm:$0xff]
    %v2056 = vld [vmem:[#allocation10 + $0x38] sm:$0xff]
    %v2057 = vld [vmem:[#allocation10 + $0x40] sm:$0xff]
    %v2058 = vld [vmem:[#allocation10 + $0x48] sm:$0xff]
    %v2059 = vld [vmem:[#allocation10 + $0x50] sm:$0xff]
    %v2060 = vld [vmem:[#allocation10 + $0x58] sm:$0xff]
    %v2061 = vld [vmem:[#allocation10 + $0x60] sm:$0xff]
    %v2062 = vld [vmem:[#allocation10 + $0x68] sm:$0xff]
    %v2063 = vld [vmem:[#allocation10 + $0x70] sm:$0xff]
    %v2064 = vld [vmem:[#allocation10 + $0x78] sm:$0xff]
    %v2065 = vld [vmem:[#allocation11] sm:$0x1]
    %v2067 = vlaneseq
    %v2068 = vshrl.u32 %v2067, 7
    %v2069 = vsub.s32 0, %v2068
    %v2070 = vrot.slane %v2065, %v2069
    %2072 = vmatprep.subr.mxu0 0.0
    %2073 = vmatpush1.msra.mxu0 %v2064
    %2074 = vmatprep.subr.mxu0 0.0
    %2075 = vmatpush1.msra.mxu0 %v2063
    %2076 = vmatprep.subr.mxu0 0.0
    %2077 = vmatpush1.msra.mxu0 %v2062
    %2078 = vmatprep.subr.mxu0 0.0
    %2079 = vmatpush1.msra.mxu0 %v2061
    %2080 = vmatprep.subr.mxu0 0.0
    %2081 = vmatpush1.msra.mxu0 %v2060
    %2082 = vmatprep.subr.mxu0 0.0
    %2083 = vmatpush1.msra.mxu0 %v2059
    %2084 = vmatprep.subr.mxu0 0.0
    %2085 = vmatpush1.msra.mxu0 %v2058
    %2086 = vmatprep.subr.mxu0 0.0
    %2087 = vmatpush1.msra.mxu0 %v2057
    %2088 = vmatprep.subr.mxu0 0.0
    %2089 = vmatpush1.msra.mxu0 %v2056
    %2090 = vmatprep.subr.mxu0 0.0
    %2091 = vmatpush1.msra.mxu0 %v2055
    %2092 = vmatprep.subr.mxu0 0.0
    %2093 = vmatpush1.msra.mxu0 %v2054
    %2094 = vmatprep.subr.mxu0 0.0
    %2095 = vmatpush1.msra.mxu0 %v2053
    %2096 = vmatprep.subr.mxu0 0.0
    %2097 = vmatpush1.msra.mxu0 %v2052
    %2098 = vmatprep.subr.mxu0 0.0
    %2099 = vmatpush1.msra.mxu0 %v2051
    %2100 = vmatprep.subr.mxu0 0.0
    %2101 = vmatpush1.msra.mxu0 %v2050
    %2102 = vmatprep.subr.mxu0 0.0
    %2103 = vmatpush1.msra.mxu0 %v2049
    %2104 = vmatprep.subr.mxu0 0.0
    %2105 = vmatpush2.msra.mxu0 0.0
    %2106 = vmatprep.subr.mxu0 0.0
    %2107 = vmatpush2.msra.mxu0 0.0
    %2108 = vmatprep.subr.mxu0 0.0
    %2109 = vmatpush2.msra.mxu0 0.0
    %2110 = vmatprep.subr.mxu0 0.0
    %2111 = vmatpush2.msra.mxu0 0.0
    %2112 = vmatprep.subr.mxu0 0.0
    %2113 = vmatpush2.msra.mxu0 0.0
    %2114 = vmatprep.subr.mxu0 0.0
    %2115 = vmatpush2.msra.mxu0 0.0
    %2116 = vmatprep.subr.mxu0 0.0
    %2117 = vmatpush2.msra.mxu0 0.0
    %2118 = vmatprep.subr.mxu0 0.0
    %2119 = vmatpush2.msra.mxu0 0.0
    %2120 = vmatprep.subr.mxu0 0.0
    %2121 = vmatpush2.msra.mxu0 0.0
    %2122 = vmatprep.subr.mxu0 0.0
    %2123 = vmatpush2.msra.mxu0 0.0
    %2124 = vmatprep.subr.mxu0 0.0
    %2125 = vmatpush2.msra.mxu0 0.0
    %2126 = vmatprep.subr.mxu0 0.0
    %2127 = vmatpush2.msra.mxu0 0.0
    %2128 = vmatprep.subr.mxu0 0.0
    %2129 = vmatpush2.msra.mxu0 0.0
    %2130 = vmatprep.subr.mxu0 0.0
    %2131 = vmatpush2.msra.mxu0 0.0
    %2132 = vmatprep.subr.mxu0 0.0
    %2133 = vmatpush2.msra.mxu0 0.0
    %2134 = vmatprep.subr.mxu0 0.0
    %2135 = vmatpush2.msra.mxu0 0.0
    %2136 = vmatprep.mubr.f32.mxu0 0.0
    %2137 = vmatmul.mubr.f32.gmra.mxu0 %v2048
    %v2138 = vpop.f32.mrf.mxu0
    %v2139 = vadd.f32 %v2070, %v2138
    %v2140 = vpop.f32.mrf.mxu0
    %2141 = vdwg.mxu0
    %v2142 = vmax.f32 %v2139, 0.0
    %v2143 = vrot.slane %v2142, 4
    %v2144 = vadd.f32 %v2142, %v2143
    %v2145 = vrot.slane %v2144, 2
    %v2146 = vadd.f32 %v2144, %v2145
    %v2147 = vrot.slane %v2146, 1
    %v2148 = vadd.f32 %v2146, %v2147
    %v2149 = vmul.f32 %v2148, %v2016
    %v2150 = vmul.f32 %v2142, %v2142
    %v2151 = vrot.slane %v2150, 4
    %v2152 = vadd.f32 %v2150, %v2151
    %v2153 = vrot.slane %v2152, 2
    %v2154 = vadd.f32 %v2152, %v2153
    %v2155 = vrot.slane %v2154, 1
    %v2156 = vadd.f32 %v2154, %v2155
    %v2157 = vmul.f32 %v2156, %v2016
    %v2158 = vmul.f32 %v2149, %v2149
    %v2159 = vsub.f32 %v2157, %v2158
    %v2160 = vld [vmem:[#allocation13] sm:$0x1]
    %v2161 = vadd.f32 %v2159, 1e-05
    %v2162 = vrsqrt.pop %v2161
    %v2163 = vmul.f32 %v2160, %v2162
    %v2164 = vld [vmem:[#allocation14] sm:$0x1]
    %v2165 = vmul.f32 %v2149, %v2163
    %v2166 = vsub.f32 %v2164, %v2165
    %v2168 = vlaneseq
    %v2169 = vshrl.u32 %v2168, 7
    %v2170 = vsub.s32 0, %v2169
    %v2171 = vrot.slane %v2163, %v2170
    %v2173 = vmul.f32 %v2142, %v2171
    %v2175 = vlaneseq
    %v2176 = vshrl.u32 %v2175, 7
    %v2177 = vsub.s32 0, %v2176
    %v2178 = vrot.slane %v2166, %v2177
    %v2180 = vadd.f32 %v2173, %v2178
    %2181 = vst [vmem:[#allocation16] sm:$0xff] %v2180
    // Predicated region
    $region70: #{fwd.1} parent=1 // pred_check
      _
    $region71: #{fwd.1} parent=1 // pred_check_branch
      %2183 = sbr.rel (0) target = $region73
    $region72: #{fwd.1} parent=1 // pred_region
      %s2185 = ssub.s32 128, 128
      %2186 = vsyncadd [#allocation4], %s2185
      %s2188 = sshll.u32 [#allocation16], 4
      %s2189 = int_to_ptr.vmem [resolvable:$true] %s2188
      %2191 = dma.vmem_to_hbm [thread:$0]  %s2189, 128, %s9, [#allocation4]
    $region73: #{fwd.1} parent=1 // pred_fallthru
      _
    // Predicated region
    $region74: #{fwd.1} parent=1 // pred_check
      _
    $region75: #{fwd.1} parent=1 // pred_check_branch
      %2193 = sbr.rel (0) target = $region77
    $region76: #{fwd.1} parent=1 // pred_region
      %2194 = dma.done [#allocation4], 128
    $region77: #{fwd.1} parent=1 // pred_fallthru
      _
    %2195 = vsyncpa [#allocation3], 1
    %2196 = vsyncpa [#allocation6], 1
    %2197 = vsyncpa [#allocation9], 1
    %2198 = vsyncpa [#allocation12], 1
    %2199 = vsyncpa [#allocation15], 1
    %2200 = vsyncpa [#allocation4], 1

</llo_original>
